<compile_context>
chip_gen: v7x
topology: tpu7x:2x2x1
jax: 0.10.0
libtpu: 0.0.40
codegen_flags: <defaults>
</compile_context>

<pallas_src>
import functools

import jax
import jax.numpy as jnp
from jax.experimental import pallas as pl
from jax.experimental.pallas import tpu as pltpu


# ----------------------------------------------------------------------------
# Fused kernel: depthwise 3x3 (+bias+ReLU) -> pointwise 1x1 (+bias+ReLU), NCHW
# ----------------------------------------------------------------------------
def _fused_dw_pw_kernel(x_ref, wdw_ref, b1_ref, wpw_ref, b2_ref, o_ref,
                        xpad_ref, *, tile_h, out_w, stride, img_h, img_w,
                        use_mxu):
    # x_ref:    (1, Cin, H, W)     full image of batch n (VMEM-resident over j)
    # wdw_ref:  (9, Cin, 1, 1)     depthwise weights, BN1 scale folded in
    # b1_ref:   (Cin, 1, 1)        folded BN1 bias
    # wpw_ref:  (Cout, Cin)   [MXU path]  or  (Cin, Cout, 1, 1)  [VPU path]
    # b2_ref:   (Cout, 1, 1)       folded BN2 bias
    # o_ref:    (1, Cout, tile_h, out_w)
    # xpad_ref: (Cin, Hs, W+2)     zero-padded image scratch (persists over j)
    cin = x_ref.shape[1]
    cout = o_ref.shape[1]
    j = pl.program_id(1)

    # ---- build the zero-padded image in VMEM once per batch element --------
    @pl.when(j == 0)
    def _():
        xpad_ref[...] = jnp.zeros_like(xpad_ref)
        xpad_ref[:, 1:img_h + 1, 1:img_w + 1] = x_ref[0].astype(xpad_ref.dtype)

    row0 = pl.multiple_of(j * (tile_h * stride), tile_h * stride)

    # ---- depthwise 3x3 (+ folded BN1 bias + ReLU) on the VPU ----------------
    acc = jnp.zeros((cin, tile_h, out_w), jnp.float32)
    for kh in range(3):
        if stride == 1:
            rows = pl.ds(row0 + kh, tile_h)
            for kw in range(3):
                patch = xpad_ref[:, rows, pl.ds(kw, out_w)]
                acc = acc + patch * wdw_ref[kh * 3 + kw]
        else:
            # one sublane-strided row load per kh, then deinterleave columns
            # once (instead of 9 strided relayouts per tile).
            rowslab = xpad_ref[:, pl.ds(row0 + kh, tile_h, stride), :]
            if stride == 2:
                even = rowslab[:, :, 0:2 * out_w + 1:2]      # (Cin, th, out_w+1)
                odd = rowslab[:, :, 1:2 * out_w:2]           # (Cin, th, out_w)
                taps = (even[:, :, :out_w], odd, even[:, :, 1:])
            else:
                taps = tuple(
                    rowslab[:, :, kw:kw + (out_w - 1) * stride + 1:stride]
                    for kw in range(3))
            for kw in range(3):
                acc = acc + taps[kw] * wdw_ref[kh * 3 + kw]
    y = jnp.maximum(acc + b1_ref[...], 0.0)                  # (Cin, th, out_w)

    # ---- pointwise 1x1 (+ folded BN2 bias + ReLU) ---------------------------
    if use_mxu:
        # (Cout, Cin) @ (Cin, th*out_w) on the MXU with f32 accumulation.
        # TODO(synk): the (Cin, th, out_w) -> (Cin, th*out_w) merge is a VMEM
        #   relayout when out_w % 128 != 0; a lane-dense repack would remove it.
        y2 = y.reshape(cin, tile_h * out_w)
        z = jnp.dot(wpw_ref[...], y2, preferred_element_type=jnp.float32)
        z = z.reshape(cout, tile_h, out_w)
    else:
        # tiny channel counts (demo 4x8): the MXU would be ~idle -> VPU FMAs.
        z = jnp.zeros((cout, tile_h, out_w), jnp.float32)
        for ci in range(cin):
            z = z + y[ci][None, :, :] * wpw_ref[ci]
    o_ref[0] = jnp.maximum(z + b2_ref[...], 0.0).astype(o_ref.dtype)


# ----------------------------------------------------------------------------
# Host-side helpers
# ----------------------------------------------------------------------------
def _round_up(x, m):
    return (x + m - 1) // m * m


def fold_bn(gamma, beta, mean, var, eps=1e-5):
    scale = gamma / jnp.sqrt(var + eps)
    return scale, beta - mean * scale


def _pick_tile_h(out_h, out_w, cin, cout):
    """VMEM-aware output-row tile: aim for ~2K output pixels per grid step."""
    row_bytes = 4 * _round_up(out_w, 128) * (3 * cin + 2 * cout)
    budget_rows = max(1, (8 << 20) // row_bytes)      # keep temporaries <= ~8 MiB
    target_rows = max(1, -(-2048 // out_w))
    th = min(budget_rows, target_rows)
    if th >= out_h:
        return out_h
    th = max(8, (th // 8) * 8)                        # 2nd-minor block dim rule
    return out_h if th >= out_h else th


def _vmem_limit_bytes(est_bytes):
    try:
        cap = pltpu.get_tpu_info().vmem_capacity_bytes  # 128 MiB v5e/v6e, 64 MiB v7x
    except Exception:
        cap = 64 * 1024 * 1024
    want = max(32 * 1024 * 1024, 2 * est_bytes + (8 << 20))
    return int(min(want, int(0.9 * cap)))


# ----------------------------------------------------------------------------
# Wrapper (NCHW in -> NCHW out, matching the PyTorch module)
# ----------------------------------------------------------------------------
def mobilenet_block_forward(x_nchw, params, stride=1, eps=1e-5):
    n, cin, h, w = x_nchw.shape
    cout = params["w_pw"].shape[0]
    out_h = (h - 1) // stride + 1                      # == PyTorch output size
    out_w = (w - 1) // stride + 1

    # Fold inference-mode BN into the conv weights; only biases enter the kernel.
    s1, b1 = fold_bn(params["bn1_gamma"], params["bn1_beta"],
                     params["bn1_mean"], params["bn1_var"], eps)
    s2, b2 = fold_bn(params["bn2_gamma"], params["bn2_beta"],
                     params["bn2_mean"], params["bn2_var"], eps)
    w_dw = params["w_dw"].reshape(cin, 3, 3).astype(jnp.float32) * s1[:, None, None]
    wdw_k = jnp.transpose(w_dw, (1, 2, 0)).reshape(9, cin, 1, 1)
    b1_k = b1.reshape(cin, 1, 1).astype(jnp.float32)
    w_pw = params["w_pw"].reshape(cout, cin).astype(jnp.float32) * s2[:, None]
    b2_k = b2.reshape(cout, 1, 1).astype(jnp.float32)

    use_mxu = min(cin, cout) >= 32
    if use_mxu:
        wpw_k = w_pw                                              # (Cout, Cin)
        wpw_spec = pl.BlockSpec((cout, cin), lambda i, j: (0, 0))
    else:
        wpw_k = jnp.transpose(w_pw, (1, 0)).reshape(cin, cout, 1, 1)
        wpw_spec = pl.BlockSpec((cin, cout, 1, 1), lambda i, j: (0, 0, 0, 0))

    tile_h = _pick_tile_h(out_h, out_w, cin, cout)
    n_h_tiles = -(-out_h // tile_h)
    # Padded-image scratch tall enough that even the partial last tile's taps
    # stay in bounds (extra rows are zero; their output rows are masked off).
    scratch_rows = max(h + 2, (n_h_tiles * tile_h - 1) * stride + 3)

    est = (2 * cin * _round_up(h, 8) * _round_up(w, 128) * 4
           + 2 * cout * _round_up(tile_h, 8) * _round_up(out_w, 128) * 4
           + cin * _round_up(scratch_rows, 8) * _round_up(w + 2, 128) * 4
           + 2 * (9 * cin + cin + cout) * 8 * 128 * 4
           + 2 * (cin * cout * 8 * 128 * 4 if not use_mxu
                  else _round_up(cout, 8) * _round_up(cin, 128) * 4)
           + 8 * cin * _round_up(tile_h, 8) * _round_up(out_w, 128) * 4)

    kernel = functools.partial(_fused_dw_pw_kernel, tile_h=tile_h, out_w=out_w,
                               stride=stride, img_h=h, img_w=w, use_mxu=use_mxu)
    out = pl.pallas_call(
        kernel,
        out_shape=jax.ShapeDtypeStruct((n, cout, out_h, out_w), x_nchw.dtype),
        grid_spec=pltpu.PrefetchScalarGridSpec(
            num_scalar_prefetch=0,
            grid=(n, n_h_tiles),
            in_specs=[
                # full image per batch element; block index only changes with n
                # so it stays VMEM-resident across the h tiles.
                # TODO(synk): pipeline_mode=pl.Buffered(1) would halve this
                #   block's footprint if VMEM ever gets tight on v7x.
                pl.BlockSpec((1, cin, h, w), lambda i, j: (i, 0, 0, 0)),
                pl.BlockSpec((9, cin, 1, 1), lambda i, j: (0, 0, 0, 0)),
                pl.BlockSpec((cin, 1, 1), lambda i, j: (0, 0, 0)),
                wpw_spec,
                pl.BlockSpec((cout, 1, 1), lambda i, j: (0, 0, 0)),
            ],
            out_specs=pl.BlockSpec((1, cout, tile_h, out_w),
                                   lambda i, j: (i, 0, j, 0)),
            scratch_shapes=[pltpu.VMEM((cin, scratch_rows, w + 2), jnp.float32)],
        ),
        compiler_params=pltpu.CompilerParams(
            # h axis "arbitrary": the padded-image scratch is filled at j == 0
            # and reused by the later h tiles of the same batch element.
            dimension_semantics=("parallel", "arbitrary"),
            vmem_limit_bytes=_vmem_limit_bytes(est)),
    )(x_nchw, wdw_k, b1_k, wpw_k, b2_k)
    return out


# ----------------------------------------------------------------------------
# Pure-JAX reference (correctness check only)
# ----------------------------------------------------------------------------
def reference_forward(x_nchw, params, stride=1, eps=1e-5):
    cin = x_nchw.shape[1]
    s1, b1 = fold_bn(params["bn1_gamma"], params["bn1_beta"],
                     params["bn1_mean"], params["bn1_var"], eps)
    s2, b2 = fold_bn(params["bn2_gamma"], params["bn2_beta"],
                     params["bn2_mean"], params["bn2_var"], eps)
    y = jax.lax.conv_general_dilated(
        x_nchw, params["w_dw"], window_strides=(stride, stride),
        padding=((1, 1), (1, 1)), feature_group_count=cin,
        dimension_numbers=("NCHW", "OIHW", "NCHW"))
    y = jnp.maximum(y * s1[None, :, None, None] + b1[None, :, None, None], 0.0)
    z = jax.lax.conv_general_dilated(
        y, params["w_pw"], window_strides=(1, 1), padding="VALID",
        dimension_numbers=("NCHW", "OIHW", "NCHW"))
    z = jnp.maximum(z * s2[None, :, None, None] + b2[None, :, None, None], 0.0)
    return z


if __name__ == "__main__":
    N, Cin, Cout, H, W = 2, 4, 8, 16, 16
    stride = 1

    key = jax.random.PRNGKey(0)
    k = jax.random.split(key, 12)
    x = jax.random.normal(k[0], (N, Cin, H, W), dtype=jnp.float32)

    params = {
        # PyTorch layouts: conv1.weight (Cin,1,3,3), conv2.weight (Cout,Cin,1,1)
        "w_dw": 0.3 * jax.random.normal(k[1], (Cin, 1, 3, 3), jnp.float32),
        "w_pw": 0.3 * jax.random.normal(k[2], (Cout, Cin, 1, 1), jnp.float32),
        "bn1_gamma": 1.0 + 0.1 * jax.random.normal(k[3], (Cin,), jnp.float32),
        "bn1_beta": 0.1 * jax.random.normal(k[4], (Cin,), jnp.float32),
        "bn1_mean": 0.1 * jax.random.normal(k[5], (Cin,), jnp.float32),
        "bn1_var": 1.0 + 0.1 * jax.random.uniform(k[6], (Cin,), jnp.float32),
        "bn2_gamma": 1.0 + 0.1 * jax.random.normal(k[7], (Cout,), jnp.float32),
        "bn2_beta": 0.1 * jax.random.normal(k[8], (Cout,), jnp.float32),
        "bn2_mean": 0.1 * jax.random.normal(k[9], (Cout,), jnp.float32),
        "bn2_var": 1.0 + 0.1 * jax.random.uniform(k[10], (Cout,), jnp.float32),
    }

    out = jax.block_until_ready(mobilenet_block_forward(x, params, stride))
    ref = jax.block_until_ready(reference_forward(x, params, stride))

    assert out.shape == ref.shape, (out.shape, ref.shape)
    max_err = float(jnp.max(jnp.abs(out - ref)))
    assert jnp.allclose(out, ref, rtol=1e-3, atol=1e-3), max_err

    print("KERNEL_OK")
</pallas_src>

<mosaic_0001>
module attributes {stable_mosaic.version = 11 : i64} {
  func.func @_fused_dw_pw_kernel(%arg0: i32, %arg1: i32, %arg2: memref<1x4x16x16xf32, #tpu.memory_space<vmem>>, %arg3: memref<9x4x1x1xf32, #tpu.memory_space<vmem>>, %arg4: memref<4x1x1xf32, #tpu.memory_space<vmem>>, %arg5: memref<4x8x1x1xf32, #tpu.memory_space<vmem>>, %arg6: memref<8x1x1xf32, #tpu.memory_space<vmem>>, %arg7: memref<1x8x16x16xf32, #tpu.memory_space<vmem>>, %arg8: memref<4x18x18xf32, #tpu.memory_space<vmem>>) attributes {dimension_semantics = [#tpu.dimension_semantics<parallel>, #tpu.dimension_semantics<arbitrary>], iteration_bounds = array<i64: 2, 1>, scalar_prefetch = 0 : i64, scratch_operands = 1 : i64, tpu.core_type = #tpu.core_type<tc>, window_params = [{transform_indices = @transform_0, window_bounds = array<i64: 1, 4, 16, 16>}, {pipeline_mode = #tpu.pipeline_mode<synchronous>, transform_indices = @transform_1, window_bounds = array<i64: 9, 4, 1, 1>}, {pipeline_mode = #tpu.pipeline_mode<synchronous>, transform_indices = @transform_2, window_bounds = array<i64: 4, 1, 1>}, {pipeline_mode = #tpu.pipeline_mode<synchronous>, transform_indices = @transform_3, window_bounds = array<i64: 4, 8, 1, 1>}, {pipeline_mode = #tpu.pipeline_mode<synchronous>, transform_indices = @transform_4, window_bounds = array<i64: 8, 1, 1>}, {transform_indices = @transform_5, window_bounds = array<i64: 1, 8, 16, 16>}]} {
    %c0_i32 = arith.constant 0 : i32
    %0 = arith.cmpi eq, %arg1, %c0_i32 : i32
    %1 = arith.extui %0 : i1 to i32
    %c0_i32_0 = arith.constant 0 : i32
    %2 = arith.cmpi ne, %1, %c0_i32_0 : i32
    scf.if %2 {
      %cst_76 = arith.constant 0.000000e+00 : f32
      %122 = vector.broadcast %cst_76 : f32 to vector<4x18x18xf32>
      %c0_77 = arith.constant 0 : index
      %c0_78 = arith.constant 0 : index
      %c0_79 = arith.constant 0 : index
      %123 = vector.load %arg8[%c0_77, %c0_78, %c0_79] : memref<4x18x18xf32, #tpu.memory_space<vmem>>, vector<4x18x18xf32>
      tpu.vector_store %arg8[%c0_77, %c0_78, %c0_79], %122 {strides = array<i32>} : memref<4x18x18xf32, #tpu.memory_space<vmem>>, vector<4x18x18xf32>,
      %c0_80 = arith.constant 0 : index
      %c0_81 = arith.constant 0 : index
      %c0_82 = arith.constant 0 : index
      %c0_83 = arith.constant 0 : index
      %124 = vector.load %arg2[%c0_80, %c0_81, %c0_82, %c0_83] : memref<1x4x16x16xf32, #tpu.memory_space<vmem>>, vector<1x4x16x16xf32>
      %125 = vector.shape_cast %124 : vector<1x4x16x16xf32> to vector<4x16x16xf32>
      %c0_84 = arith.constant 0 : index
      %c1_85 = arith.constant 1 : index
      %c1_86 = arith.constant 1 : index
      %126 = vector.load %arg8[%c0_84, %c1_85, %c1_86] : memref<4x18x18xf32, #tpu.memory_space<vmem>>, vector<4x16x16xf32>
      tpu.vector_store %arg8[%c0_84, %c1_85, %c1_86], %125 {strides = array<i32>} : memref<4x18x18xf32, #tpu.memory_space<vmem>>, vector<4x16x16xf32>,
    } else {
    }
    %c16_i32 = arith.constant 16 : i32
    %3 = arith.muli %arg1, %c16_i32 : i32
    %4 = tpu.assume_multiple %3, 16 : i32
    %cst = arith.constant 0.000000e+00 : f32
    %5 = vector.broadcast %cst : f32 to vector<4x16x16xf32>
    %c0_i32_1 = arith.constant 0 : i32
    %6 = arith.addi %4, %c0_i32_1 : i32
    %c0 = arith.constant 0 : index
    %7 = arith.index_cast %6 : i32 to index
    %c0_2 = arith.constant 0 : index
    %8 = vector.load %arg8[%c0, %7, %c0_2] : memref<4x18x18xf32, #tpu.memory_space<vmem>>, vector<4x16x16xf32>
    %c0_3 = arith.constant 0 : index
    %c0_4 = arith.constant 0 : index
    %c0_5 = arith.constant 0 : index
    %c0_6 = arith.constant 0 : index
    %9 = vector.load %arg3[%c0_3, %c0_4, %c0_5, %c0_6] : memref<9x4x1x1xf32, #tpu.memory_space<vmem>>, vector<1x4x1x1xf32>
    %10 = vector.shape_cast %9 : vector<1x4x1x1xf32> to vector<4x1x1xf32>
    %11 = vector.broadcast %10 : vector<4x1x1xf32> to vector<4x16x16xf32>
    %12 = arith.mulf %8, %11 : vector<4x16x16xf32>
    %13 = arith.addf %5, %12 : vector<4x16x16xf32>
    %c0_7 = arith.constant 0 : index
    %14 = arith.index_cast %6 : i32 to index
    %c1 = arith.constant 1 : index
    %15 = vector.load %arg8[%c0_7, %14, %c1] : memref<4x18x18xf32, #tpu.memory_space<vmem>>, vector<4x16x16xf32>
    %c1_8 = arith.constant 1 : index
    %c0_9 = arith.constant 0 : index
    %c0_10 = arith.constant 0 : index
    %c0_11 = arith.constant 0 : index
    %16 = vector.load %arg3[%c1_8, %c0_9, %c0_10, %c0_11] : memref<9x4x1x1xf32, #tpu.memory_space<vmem>>, vector<1x4x1x1xf32>
    %17 = vector.shape_cast %16 : vector<1x4x1x1xf32> to vector<4x1x1xf32>
    %18 = vector.broadcast %17 : vector<4x1x1xf32> to vector<4x16x16xf32>
    %19 = arith.mulf %15, %18 : vector<4x16x16xf32>
    %20 = arith.addf %13, %19 : vector<4x16x16xf32>
    %c0_12 = arith.constant 0 : index
    %21 = arith.index_cast %6 : i32 to index
    %c2 = arith.constant 2 : index
    %22 = vector.load %arg8[%c0_12, %21, %c2] : memref<4x18x18xf32, #tpu.memory_space<vmem>>, vector<4x16x16xf32>
    %c2_13 = arith.constant 2 : index
    %c0_14 = arith.constant 0 : index
    %c0_15 = arith.constant 0 : index
    %c0_16 = arith.constant 0 : index
    %23 = vector.load %arg3[%c2_13, %c0_14, %c0_15, %c0_16] : memref<9x4x1x1xf32, #tpu.memory_space<vmem>>, vector<1x4x1x1xf32>
    %24 = vector.shape_cast %23 : vector<1x4x1x1xf32> to vector<4x1x1xf32>
    %25 = vector.broadcast %24 : vector<4x1x1xf32> to vector<4x16x16xf32>
    %26 = arith.mulf %22, %25 : vector<4x16x16xf32>
    %27 = arith.addf %20, %26 : vector<4x16x16xf32>
    %c1_i32 = arith.constant 1 : i32
    %28 = arith.addi %4, %c1_i32 : i32
    %c0_17 = arith.constant 0 : index
    %29 = arith.index_cast %28 : i32 to index
    %c0_18 = arith.constant 0 : index
    %30 = vector.load %arg8[%c0_17, %29, %c0_18] : memref<4x18x18xf32, #tpu.memory_space<vmem>>, vector<4x16x16xf32>
    %c3 = arith.constant 3 : index
    %c0_19 = arith.constant 0 : index
    %c0_20 = arith.constant 0 : index
    %c0_21 = arith.constant 0 : index
    %31 = vector.load %arg3[%c3, %c0_19, %c0_20, %c0_21] : memref<9x4x1x1xf32, #tpu.memory_space<vmem>>, vector<1x4x1x1xf32>
    %32 = vector.shape_cast %31 : vector<1x4x1x1xf32> to vector<4x1x1xf32>
    %33 = vector.broadcast %32 : vector<4x1x1xf32> to vector<4x16x16xf32>
    %34 = arith.mulf %30, %33 : vector<4x16x16xf32>
    %35 = arith.addf %27, %34 : vector<4x16x16xf32>
    %c0_22 = arith.constant 0 : index
    %36 = arith.index_cast %28 : i32 to index
    %c1_23 = arith.constant 1 : index
    %37 = vector.load %arg8[%c0_22, %36, %c1_23] : memref<4x18x18xf32, #tpu.memory_space<vmem>>, vector<4x16x16xf32>
    %c4 = arith.constant 4 : index
    %c0_24 = arith.constant 0 : index
    %c0_25 = arith.constant 0 : index
    %c0_26 = arith.constant 0 : index
    %38 = vector.load %arg3[%c4, %c0_24, %c0_25, %c0_26] : memref<9x4x1x1xf32, #tpu.memory_space<vmem>>, vector<1x4x1x1xf32>
    %39 = vector.shape_cast %38 : vector<1x4x1x1xf32> to vector<4x1x1xf32>
    %40 = vector.broadcast %39 : vector<4x1x1xf32> to vector<4x16x16xf32>
    %41 = arith.mulf %37, %40 : vector<4x16x16xf32>
    %42 = arith.addf %35, %41 : vector<4x16x16xf32>
    %c0_27 = arith.constant 0 : index
    %43 = arith.index_cast %28 : i32 to index
    %c2_28 = arith.constant 2 : index
    %44 = vector.load %arg8[%c0_27, %43, %c2_28] : memref<4x18x18xf32, #tpu.memory_space<vmem>>, vector<4x16x16xf32>
    %c5 = arith.constant 5 : index
    %c0_29 = arith.constant 0 : index
    %c0_30 = arith.constant 0 : index
    %c0_31 = arith.constant 0 : index
    %45 = vector.load %arg3[%c5, %c0_29, %c0_30, %c0_31] : memref<9x4x1x1xf32, #tpu.memory_space<vmem>>, vector<1x4x1x1xf32>
    %46 = vector.shape_cast %45 : vector<1x4x1x1xf32> to vector<4x1x1xf32>
    %47 = vector.broadcast %46 : vector<4x1x1xf32> to vector<4x16x16xf32>
    %48 = arith.mulf %44, %47 : vector<4x16x16xf32>
    %49 = arith.addf %42, %48 : vector<4x16x16xf32>
    %c2_i32 = arith.constant 2 : i32
    %50 = arith.addi %4, %c2_i32 : i32
    %c0_32 = arith.constant 0 : index
    %51 = arith.index_cast %50 : i32 to index
    %c0_33 = arith.constant 0 : index
    %52 = vector.load %arg8[%c0_32, %51, %c0_33] : memref<4x18x18xf32, #tpu.memory_space<vmem>>, vector<4x16x16xf32>
    %c6 = arith.constant 6 : index
    %c0_34 = arith.constant 0 : index
    %c0_35 = arith.constant 0 : index
    %c0_36 = arith.constant 0 : index
    %53 = vector.load %arg3[%c6, %c0_34, %c0_35, %c0_36] : memref<9x4x1x1xf32, #tpu.memory_space<vmem>>, vector<1x4x1x1xf32>
    %54 = vector.shape_cast %53 : vector<1x4x1x1xf32> to vector<4x1x1xf32>
    %55 = vector.broadcast %54 : vector<4x1x1xf32> to vector<4x16x16xf32>
    %56 = arith.mulf %52, %55 : vector<4x16x16xf32>
    %57 = arith.addf %49, %56 : vector<4x16x16xf32>
    %c0_37 = arith.constant 0 : index
    %58 = arith.index_cast %50 : i32 to index
    %c1_38 = arith.constant 1 : index
    %59 = vector.load %arg8[%c0_37, %58, %c1_38] : memref<4x18x18xf32, #tpu.memory_space<vmem>>, vector<4x16x16xf32>
    %c7 = arith.constant 7 : index
    %c0_39 = arith.constant 0 : index
    %c0_40 = arith.constant 0 : index
    %c0_41 = arith.constant 0 : index
    %60 = vector.load %arg3[%c7, %c0_39, %c0_40, %c0_41] : memref<9x4x1x1xf32, #tpu.memory_space<vmem>>, vector<1x4x1x1xf32>
    %61 = vector.shape_cast %60 : vector<1x4x1x1xf32> to vector<4x1x1xf32>
    %62 = vector.broadcast %61 : vector<4x1x1xf32> to vector<4x16x16xf32>
    %63 = arith.mulf %59, %62 : vector<4x16x16xf32>
    %64 = arith.addf %57, %63 : vector<4x16x16xf32>
    %c0_42 = arith.constant 0 : index
    %65 = arith.index_cast %50 : i32 to index
    %c2_43 = arith.constant 2 : index
    %66 = vector.load %arg8[%c0_42, %65, %c2_43] : memref<4x18x18xf32, #tpu.memory_space<vmem>>, vector<4x16x16xf32>
    %c8 = arith.constant 8 : index
    %c0_44 = arith.constant 0 : index
    %c0_45 = arith.constant 0 : index
    %c0_46 = arith.constant 0 : index
    %67 = vector.load %arg3[%c8, %c0_44, %c0_45, %c0_46] : memref<9x4x1x1xf32, #tpu.memory_space<vmem>>, vector<1x4x1x1xf32>
    %68 = vector.shape_cast %67 : vector<1x4x1x1xf32> to vector<4x1x1xf32>
    %69 = vector.broadcast %68 : vector<4x1x1xf32> to vector<4x16x16xf32>
    %70 = arith.mulf %66, %69 : vector<4x16x16xf32>
    %71 = arith.addf %64, %70 : vector<4x16x16xf32>
    %c0_47 = arith.constant 0 : index
    %c0_48 = arith.constant 0 : index
    %c0_49 = arith.constant 0 : index
    %72 = vector.load %arg4[%c0_47, %c0_48, %c0_49] : memref<4x1x1xf32, #tpu.memory_space<vmem>>, vector<4x1x1xf32>
    %73 = vector.broadcast %72 : vector<4x1x1xf32> to vector<4x16x16xf32>
    %74 = arith.addf %71, %73 : vector<4x16x16xf32>
    %cst_50 = arith.constant 0.000000e+00 : f32
    %75 = vector.broadcast %cst_50 : f32 to vector<4x16x16xf32>
    %76 = arith.maximumf %74, %75 : vector<4x16x16xf32>
    %cst_51 = arith.constant 0.000000e+00 : f32
    %77 = vector.broadcast %cst_51 : f32 to vector<8x16x16xf32>
    %78 = vector.extract_strided_slice %76 {offsets = [0, 0, 0], sizes = [1, 16, 16], strides = [1, 1, 1]} : vector<4x16x16xf32> to vector<1x16x16xf32>
    %79 = vector.shape_cast %78 : vector<1x16x16xf32> to vector<16x16xf32>
    %80 = vector.shape_cast %79 : vector<16x16xf32> to vector<1x16x16xf32>
    %c0_52 = arith.constant 0 : index
    %c0_53 = arith.constant 0 : index
    %c0_54 = arith.constant 0 : index
    %c0_55 = arith.constant 0 : index
    %81 = vector.load %arg5[%c0_52, %c0_53, %c0_54, %c0_55] : memref<4x8x1x1xf32, #tpu.memory_space<vmem>>, vector<1x8x1x1xf32>
    %82 = vector.shape_cast %81 : vector<1x8x1x1xf32> to vector<8x1x1xf32>
    %83 = vector.broadcast %80 : vector<1x16x16xf32> to vector<8x16x16xf32>
    %84 = vector.broadcast %82 : vector<8x1x1xf32> to vector<8x16x16xf32>
    %85 = arith.mulf %83, %84 : vector<8x16x16xf32>
    %86 = arith.addf %77, %85 : vector<8x16x16xf32>
    %87 = vector.extract_strided_slice %76 {offsets = [1, 0, 0], sizes = [1, 16, 16], strides = [1, 1, 1]} : vector<4x16x16xf32> to vector<1x16x16xf32>
    %88 = vector.shape_cast %87 : vector<1x16x16xf32> to vector<16x16xf32>
    %89 = vector.shape_cast %88 : vector<16x16xf32> to vector<1x16x16xf32>
    %c1_56 = arith.constant 1 : index
    %c0_57 = arith.constant 0 : index
    %c0_58 = arith.constant 0 : index
    %c0_59 = arith.constant 0 : index
    %90 = vector.load %arg5[%c1_56, %c0_57, %c0_58, %c0_59] : memref<4x8x1x1xf32, #tpu.memory_space<vmem>>, vector<1x8x1x1xf32>
    %91 = vector.shape_cast %90 : vector<1x8x1x1xf32> to vector<8x1x1xf32>
    %92 = vector.broadcast %89 : vector<1x16x16xf32> to vector<8x16x16xf32>
    %93 = vector.broadcast %91 : vector<8x1x1xf32> to vector<8x16x16xf32>
    %94 = arith.mulf %92, %93 : vector<8x16x16xf32>
    %95 = arith.addf %86, %94 : vector<8x16x16xf32>
    %96 = vector.extract_strided_slice %76 {offsets = [2, 0, 0], sizes = [1, 16, 16], strides = [1, 1, 1]} : vector<4x16x16xf32> to vector<1x16x16xf32>
    %97 = vector.shape_cast %96 : vector<1x16x16xf32> to vector<16x16xf32>
    %98 = vector.shape_cast %97 : vector<16x16xf32> to vector<1x16x16xf32>
    %c2_60 = arith.constant 2 : index
    %c0_61 = arith.constant 0 : index
    %c0_62 = arith.constant 0 : index
    %c0_63 = arith.constant 0 : index
    %99 = vector.load %arg5[%c2_60, %c0_61, %c0_62, %c0_63] : memref<4x8x1x1xf32, #tpu.memory_space<vmem>>, vector<1x8x1x1xf32>
    %100 = vector.shape_cast %99 : vector<1x8x1x1xf32> to vector<8x1x1xf32>
    %101 = vector.broadcast %98 : vector<1x16x16xf32> to vector<8x16x16xf32>
    %102 = vector.broadcast %100 : vector<8x1x1xf32> to vector<8x16x16xf32>
    %103 = arith.mulf %101, %102 : vector<8x16x16xf32>
    %104 = arith.addf %95, %103 : vector<8x16x16xf32>
    %105 = vector.extract_strided_slice %76 {offsets = [3, 0, 0], sizes = [1, 16, 16], strides = [1, 1, 1]} : vector<4x16x16xf32> to vector<1x16x16xf32>
    %106 = vector.shape_cast %105 : vector<1x16x16xf32> to vector<16x16xf32>
    %107 = vector.shape_cast %106 : vector<16x16xf32> to vector<1x16x16xf32>
    %c3_64 = arith.constant 3 : index
    %c0_65 = arith.constant 0 : index
    %c0_66 = arith.constant 0 : index
    %c0_67 = arith.constant 0 : index
    %108 = vector.load %arg5[%c3_64, %c0_65, %c0_66, %c0_67] : memref<4x8x1x1xf32, #tpu.memory_space<vmem>>, vector<1x8x1x1xf32>
    %109 = vector.shape_cast %108 : vector<1x8x1x1xf32> to vector<8x1x1xf32>
    %110 = vector.broadcast %107 : vector<1x16x16xf32> to vector<8x16x16xf32>
    %111 = vector.broadcast %109 : vector<8x1x1xf32> to vector<8x16x16xf32>
    %112 = arith.mulf %110, %111 : vector<8x16x16xf32>
    %113 = arith.addf %104, %112 : vector<8x16x16xf32>
    %c0_68 = arith.constant 0 : index
    %c0_69 = arith.constant 0 : index
    %c0_70 = arith.constant 0 : index
    %114 = vector.load %arg6[%c0_68, %c0_69, %c0_70] : memref<8x1x1xf32, #tpu.memory_space<vmem>>, vector<8x1x1xf32>
    %115 = vector.broadcast %114 : vector<8x1x1xf32> to vector<8x16x16xf32>
    %116 = arith.addf %113, %115 : vector<8x16x16xf32>
    %cst_71 = arith.constant 0.000000e+00 : f32
    %117 = vector.broadcast %cst_71 : f32 to vector<8x16x16xf32>
    %118 = arith.maximumf %116, %117 : vector<8x16x16xf32>
    %c0_72 = arith.constant 0 : index
    %c0_73 = arith.constant 0 : index
    %c0_74 = arith.constant 0 : index
    %c0_75 = arith.constant 0 : index
    %119 = vector.load %arg7[%c0_72, %c0_73, %c0_74, %c0_75] : memref<1x8x16x16xf32, #tpu.memory_space<vmem>>, vector<1x8x16x16xf32>
    %120 = vector.shape_cast %119 : vector<1x8x16x16xf32> to vector<8x16x16xf32>
    %121 = vector.shape_cast %118 : vector<8x16x16xf32> to vector<1x8x16x16xf32>
    tpu.vector_store %arg7[%c0_72, %c0_73, %c0_74, %c0_75], %121 {strides = array<i32>} : memref<1x8x16x16xf32, #tpu.memory_space<vmem>>, vector<1x8x16x16xf32>,
    return
  }
  func.func @transform_0(%arg0: i32, %arg1: i32) -> (i32, i32, i32, i32) {
    %c0_i32 = arith.constant 0 : i32
    %c0_i32_0 = arith.constant 0 : i32
    %c0_i32_1 = arith.constant 0 : i32
    %c0_i32_2 = arith.constant 0 : i32
    return %arg0, %c0_i32, %c0_i32_0, %c0_i32_1 : i32, i32, i32, i32
  }
  func.func @transform_1(%arg0: i32, %arg1: i32) -> (i32, i32, i32, i32) {
    %c0_i32 = arith.constant 0 : i32
    %c0_i32_0 = arith.constant 0 : i32
    %c0_i32_1 = arith.constant 0 : i32
    %c0_i32_2 = arith.constant 0 : i32
    %c0_i32_3 = arith.constant 0 : i32
    return %c0_i32, %c0_i32_0, %c0_i32_1, %c0_i32_2 : i32, i32, i32, i32
  }
  func.func @transform_2(%arg0: i32, %arg1: i32) -> (i32, i32, i32) {
    %c0_i32 = arith.constant 0 : i32
    %c0_i32_0 = arith.constant 0 : i32
    %c0_i32_1 = arith.constant 0 : i32
    %c0_i32_2 = arith.constant 0 : i32
    return %c0_i32, %c0_i32_0, %c0_i32_1 : i32, i32, i32
  }
  func.func @transform_3(%arg0: i32, %arg1: i32) -> (i32, i32, i32, i32) {
    %c0_i32 = arith.constant 0 : i32
    %c0_i32_0 = arith.constant 0 : i32
    %c0_i32_1 = arith.constant 0 : i32
    %c0_i32_2 = arith.constant 0 : i32
    %c0_i32_3 = arith.constant 0 : i32
    return %c0_i32, %c0_i32_0, %c0_i32_1, %c0_i32_2 : i32, i32, i32, i32
  }
  func.func @transform_4(%arg0: i32, %arg1: i32) -> (i32, i32, i32) {
    %c0_i32 = arith.constant 0 : i32
    %c0_i32_0 = arith.constant 0 : i32
    %c0_i32_1 = arith.constant 0 : i32
    %c0_i32_2 = arith.constant 0 : i32
    return %c0_i32, %c0_i32_0, %c0_i32_1 : i32, i32, i32
  }
  func.func @transform_5(%arg0: i32, %arg1: i32) -> (i32, i32, i32, i32) {
    %c0_i32 = arith.constant 0 : i32
    %c0_i32_0 = arith.constant 0 : i32
    %c0_i32_1 = arith.constant 0 : i32
    return %arg0, %c0_i32, %arg1, %c0_i32_0 : i32, i32, i32, i32
  }
}

</mosaic_0001>

<llo_original>
// kernel: tpu_custom_call.1
$region0: #{tpu_custom_call.1}
  #allocation0 [shape = 'u32[]', space=smem, size = 0x4, offset = 0x4, fixed_abs, tag = 'smem constant byte address 0x4 - core index']
  #allocation1 [shape = 'u32[144,128]{1,0:T(1,128)}', space=vmem, size = 0x12000, scoped, tag = 'internal scratch']
  #allocation2 [shape = 'f32[4,18,18]{2,1,0:T(8,128)}', space=vmem, size = 0xc000, scoped, tag = 'scratch operand']
  %s0 = inlined_call_operand.hbm [shape: f32[2,4,16,16], index: 0, kind: input, shape index: {}]
  %s1 = inlined_call_operand.vmem [shape: f32[9,4,1,1], index: 1, kind: input, shape index: {}]
  %s2 = inlined_call_operand.vmem [shape: f32[4,1,1], index: 2, kind: input, shape index: {}]
  %s3 = inlined_call_operand.vmem [shape: f32[4,8,1,1], index: 3, kind: input, shape index: {}]
  %s4 = inlined_call_operand.vmem [shape: f32[8,1,1], index: 4, kind: input, shape index: {}]
  %s5 = inlined_call_operand.hbm [shape: f32[2,8,16,16], index: 5, kind: output, shape index: {}]
  %s6 = sld [smem:[#allocation0]]
  $region61: #{tpu_custom_call.1} parent=0
    _
  %s8 = ssub.s32 1, %s6
  %s9 = scalar_select 0, %s8, %s6
  $region1: #{tpu_custom_call.1} parent=0
    #allocation3 [shape = 'u8[65536]{0}', space=vmem, size = 0x10000, scoped, tag = 'input window, operand 0']
    #allocation4 [shape = 's32[2]{0}', space=sflag, size = 0x8, scoped, tag = 'scoped memory for tpu_custom_call.1']
    #allocation5 [shape = 's32[2]{0}', space=sflag, size = 0x8, scoped, tag = 'scoped memory for tpu_custom_call.1']
    #allocation6 [shape = 'u8[131072]{0}', space=vmem, size = 0x20000, scoped, tag = 'output window, operand 0']
    %10 = vsyncpa [#allocation4], 0
    %s11 = scalar_lea.sflag [#allocation4], 1
    %12 = vsyncpa %s11, 0
    %13 = vsyncpa [#allocation5], 0
    %s14 = scalar_lea.sflag [#allocation5], 1
    %15 = vsyncpa %s14, 0
    loop: start=0, step=1, limit=4
    $region2: #{tpu_custom_call.1} parent=1 // loop_pre_header
      _
    $region3: #{tpu_custom_call.1} parent=1 // loop_header
      %s17 = sphi 0, %s21
      %p18 = scmp.ge.s32.totalorder %s17, 4
      %s24 = sphi 0, %s36
      %s25 = sphi 0, %s32
      %s26 = sphi 0, %s24
      %s27 = sphi 0, %s25
      %s28 = sphi 0, %s26
      %s29 = sphi 0, %s27
      %s39 = sphi 0, %s41
      %s42 = sphi 0, %s39
      %s43 = sphi 0, %s42
      %s59 = sphi 0, %s43
      %s63 = sphi 0, %s63
      %s65 = sphi 0, %s63
      %s66 = sphi 0, %s65
      %s80 = sphi 0, %s66
      %s84 = sphi 0, %s84
      %s86 = sphi 0, %s84
      %s87 = sphi 0, %s86
      %s101 = sphi 0, %s87
      %s105 = sphi 0, %s105
      %s107 = sphi 0, %s105
      %s108 = sphi 0, %s107
      %s122 = sphi 0, %s108
      %s126 = sphi 0, %s126
      %s128 = sphi 0, %s126
      %s129 = sphi 0, %s128
      %s143 = sphi 0, %s129
      %s151 = sphi 0, %s153
      %s154 = sphi 0, %s151
      %s155 = sphi 0, %s154
      %s171 = sphi 0, %s155
    $region4: #{tpu_custom_call.1} parent=1 // loop_header_branch
      %20 = sbr.rel (%p18) target = $region8
    $region5: #{tpu_custom_call.1} parent=1 // loop_body
      %s22 = ssub.s32 %s17, 1
      %s23 = ssub.s32 %s17, 2
      %s30 = sadd.s32 1, %s25
      %p31 = scmp.ge.s32.totalorder %s30, 1
      %s32 = scalar_select %p31, 0, %s30
      %s33 = sadd.s32 1, %s24
      %s34 = scalar_select %p31, %s33, %s24
      %p35 = scmp.ge.s32.totalorder %s34, 2
      %s36 = scalar_select %p35, 0, %s34
      %s37 = ssub.s32 %s24, %s36
      %p38 = scmp.eq.s32.totalorder %s37, 0
      %s40 = sadd.s32 %s39, 1
      %s41 = scalar_select %p38, %s39, %s40
      %p44 = pneg %p38
      %p45 = scmp.eq.s32.totalorder %s17, 1
      %p46 = por %p44, %p45
      %p47 = scmp.ne.s32.totalorder %s39, %s42
      %p48 = scmp.eq.s32.totalorder %s17, 0
      %p49 = por %p47, %p48
      %p50 = scmp.ne.s32.totalorder %s39, %s42
      %p51 = scmp.eq.s32.totalorder %s22, 1
      %p52 = por %p50, %p51
      %p53 = scmp.ne.s32.totalorder %s42, %s43
      %p54 = scmp.eq.s32.totalorder %s22, 0
      %p55 = por %p53, %p54
      %p56 = scmp.ne.s32.totalorder %s42, %s43
      %p57 = scmp.eq.s32.totalorder %s23, 1
      %p58 = por %p56, %p57
      %p60 = scmp.ne.s32.totalorder %s43, %s59
      %p61 = scmp.eq.s32.totalorder %s23, 0
      %p62 = por %p60, %p61
      %s64 = sadd.s32 %s63, 1
      %p67 = scmp.eq.s32.totalorder %s17, 1
      %p68 = scmp.ne.s32.totalorder %s63, %s65
      %p69 = scmp.eq.s32.totalorder %s17, 0
      %p70 = por %p68, %p69
      %p71 = scmp.ne.s32.totalorder %s63, %s65
      %p72 = scmp.eq.s32.totalorder %s22, 1
      %p73 = por %p71, %p72
      %p74 = scmp.ne.s32.totalorder %s65, %s66
      %p75 = scmp.eq.s32.totalorder %s22, 0
      %p76 = por %p74, %p75
      %p77 = scmp.ne.s32.totalorder %s65, %s66
      %p78 = scmp.eq.s32.totalorder %s23, 1
      %p79 = por %p77, %p78
      %p81 = scmp.ne.s32.totalorder %s66, %s80
      %p82 = scmp.eq.s32.totalorder %s23, 0
      %p83 = por %p81, %p82
      %s85 = sadd.s32 %s84, 1
      %p88 = scmp.eq.s32.totalorder %s17, 1
      %p89 = scmp.ne.s32.totalorder %s84, %s86
      %p90 = scmp.eq.s32.totalorder %s17, 0
      %p91 = por %p89, %p90
      %p92 = scmp.ne.s32.totalorder %s84, %s86
      %p93 = scmp.eq.s32.totalorder %s22, 1
      %p94 = por %p92, %p93
      %p95 = scmp.ne.s32.totalorder %s86, %s87
      %p96 = scmp.eq.s32.totalorder %s22, 0
      %p97 = por %p95, %p96
      %p98 = scmp.ne.s32.totalorder %s86, %s87
      %p99 = scmp.eq.s32.totalorder %s23, 1
      %p100 = por %p98, %p99
      %p102 = scmp.ne.s32.totalorder %s87, %s101
      %p103 = scmp.eq.s32.totalorder %s23, 0
      %p104 = por %p102, %p103
      %s106 = sadd.s32 %s105, 1
      %p109 = scmp.eq.s32.totalorder %s17, 1
      %p110 = scmp.ne.s32.totalorder %s105, %s107
      %p111 = scmp.eq.s32.totalorder %s17, 0
      %p112 = por %p110, %p111
      %p113 = scmp.ne.s32.totalorder %s105, %s107
      %p114 = scmp.eq.s32.totalorder %s22, 1
      %p115 = por %p113, %p114
      %p116 = scmp.ne.s32.totalorder %s107, %s108
      %p117 = scmp.eq.s32.totalorder %s22, 0
      %p118 = por %p116, %p117
      %p119 = scmp.ne.s32.totalorder %s107, %s108
      %p120 = scmp.eq.s32.totalorder %s23, 1
      %p121 = por %p119, %p120
      %p123 = scmp.ne.s32.totalorder %s108, %s122
      %p124 = scmp.eq.s32.totalorder %s23, 0
      %p125 = por %p123, %p124
      %s127 = sadd.s32 %s126, 1
      %p130 = scmp.eq.s32.totalorder %s17, 1
      %p131 = scmp.ne.s32.totalorder %s126, %s128
      %p132 = scmp.eq.s32.totalorder %s17, 0
      %p133 = por %p131, %p132
      %p134 = scmp.ne.s32.totalorder %s126, %s128
      %p135 = scmp.eq.s32.totalorder %s22, 1
      %p136 = por %p134, %p135
      %p137 = scmp.ne.s32.totalorder %s128, %s129
      %p138 = scmp.eq.s32.totalorder %s22, 0
      %p139 = por %p137, %p138
      %p140 = scmp.ne.s32.totalorder %s128, %s129
      %p141 = scmp.eq.s32.totalorder %s23, 1
      %p142 = por %p140, %p141
      %p144 = scmp.ne.s32.totalorder %s129, %s143
      %p145 = scmp.eq.s32.totalorder %s23, 0
      %p146 = por %p144, %p145
      %s147 = ssub.s32 %s24, %s36
      %s148 = ssub.s32 %s25, %s32
      %s149 = sor.u32 %s147, %s148
      %p150 = scmp.eq.s32.totalorder %s149, 0
      %s152 = sadd.s32 %s151, 1
      %s153 = scalar_select %p150, %s151, %s152
      %p156 = pneg %p150
      %p157 = scmp.eq.s32.totalorder %s17, 1
      %p158 = por %p156, %p157
      %p159 = scmp.ne.s32.totalorder %s151, %s154
      %p160 = scmp.eq.s32.totalorder %s17, 0
      %p161 = por %p159, %p160
      %p162 = scmp.ne.s32.totalorder %s151, %s154
      %p163 = scmp.eq.s32.totalorder %s22, 1
      %p164 = por %p162, %p163
      %p165 = scmp.ne.s32.totalorder %s154, %s155
      %p166 = scmp.eq.s32.totalorder %s22, 0
      %p167 = por %p165, %p166
      %p168 = scmp.ne.s32.totalorder %s154, %s155
      %p169 = scmp.eq.s32.totalorder %s23, 1
      %p170 = por %p168, %p169
      %p172 = scmp.ne.s32.totalorder %s155, %s171
      %p173 = scmp.eq.s32.totalorder %s23, 0
      %p174 = por %p172, %p173
      %p175 = scmp.le.s32.totalorder 1, %s17
      %p176 = scmp.lt.s32.totalorder %s17, 3
      %p177 = pnand %p175, %p176
      %p178 = pneg %p177
      // Predicated region
      $region9: #{tpu_custom_call.1} parent=5 // pred_check
        _
      $region10: #{tpu_custom_call.1} parent=5 // pred_check_branch
        %180 = sbr.rel (%p177) target = $region12
      $region11: #{tpu_custom_call.1} parent=5 // pred_region
        %s181 = ssub.s32 %s17, 1
        // Predicated region
        $region13: #{tpu_custom_call.1} parent=11 // pred_check
          %p182 = pneg %p76
        $region14: #{tpu_custom_call.1} parent=11 // pred_check_branch
          %184 = sbr.rel (%p182) target = $region16
        $region15: #{tpu_custom_call.1} parent=11 // pred_region
          _
        $region16: #{tpu_custom_call.1} parent=11 // pred_fallthru
          _
        // Predicated region
        $region17: #{tpu_custom_call.1} parent=11 // pred_check
          %p185 = pneg %p97
        $region18: #{tpu_custom_call.1} parent=11 // pred_check_branch
          %187 = sbr.rel (%p185) target = $region20
        $region19: #{tpu_custom_call.1} parent=11 // pred_region
          _
        $region20: #{tpu_custom_call.1} parent=11 // pred_fallthru
          _
        // Predicated region
        $region21: #{tpu_custom_call.1} parent=11 // pred_check
          %p188 = pneg %p118
        $region22: #{tpu_custom_call.1} parent=11 // pred_check_branch
          %190 = sbr.rel (%p188) target = $region24
        $region23: #{tpu_custom_call.1} parent=11 // pred_region
          _
        $region24: #{tpu_custom_call.1} parent=11 // pred_fallthru
          _
        // Predicated region
        $region25: #{tpu_custom_call.1} parent=11 // pred_check
          %p191 = pneg %p139
        $region26: #{tpu_custom_call.1} parent=11 // pred_check_branch
          %193 = sbr.rel (%p191) target = $region28
        $region27: #{tpu_custom_call.1} parent=11 // pred_region
          _
        $region28: #{tpu_custom_call.1} parent=11 // pred_fallthru
          _
      $region12: #{tpu_custom_call.1} parent=5 // pred_fallthru
        _
      %p194 = scmp.lt.s32.totalorder %s17, 2
      // Predicated region
      $region29: #{tpu_custom_call.1} parent=5 // pred_check
        %p195 = pneg %p194
      $region30: #{tpu_custom_call.1} parent=5 // pred_check_branch
        %197 = sbr.rel (%p195) target = $region32
      $region31: #{tpu_custom_call.1} parent=5 // pred_region
        // Predicated region
        $region33: #{tpu_custom_call.1} parent=31 // pred_check
          %p198 = pneg %p49
        $region34: #{tpu_custom_call.1} parent=31 // pred_check_branch
          %200 = sbr.rel (%p198) target = $region36
        $region35: #{tpu_custom_call.1} parent=31 // pred_region
          %s201 = sand.u32 %s39, 1
          %s202 = scalar_lea.sflag [#allocation4], %s201
          %s203 = sand.u32 %s39, 1
          %s204 = smul.addr %s203, 64
          %s205 = scalar_lea.vmem [#allocation3], %s204
          %s207 = ssub.s32 1024, 1024
          %208 = vsyncadd %s202, %s207
          %s209 = smul.addr %s24, 8
          %s210 = smul.addr %s209, 128
          %s211 = scalar_lea.hbm %s0, %s210
          %s212 = sshll.u32 %s205, 4
          %s213 = int_to_ptr.vmem [resolvable:$true] %s212
          %218 = dma.hbm_to_vmem [thread:$0]  %s211, 1024, %s213, %s202, 128, 128, 8
        $region36: #{tpu_custom_call.1} parent=31 // pred_fallthru
          _
      $region32: #{tpu_custom_call.1} parent=5 // pred_fallthru
        _
      %p219 = scmp.le.s32.totalorder 1, %s17
      %p220 = scmp.lt.s32.totalorder %s17, 3
      %p221 = pnand %p219, %p220
      %p222 = pneg %p221
      // Predicated region
      $region37: #{tpu_custom_call.1} parent=5 // pred_check
        _
      $region38: #{tpu_custom_call.1} parent=5 // pred_check_branch
        %224 = sbr.rel (%p221) target = $region40
      $region39: #{tpu_custom_call.1} parent=5 // pred_region
        %s225 = ssub.s32 %s17, 1
        %s226 = sand.u32 %s42, 1
        %s227 = scalar_lea.sflag [#allocation4], %s226
        %s228 = sand.u32 %s42, 1
        %s229 = smul.addr %s228, 64
        %s230 = scalar_lea.vmem [#allocation3], %s229
        // Predicated region
        $region41: #{tpu_custom_call.1} parent=39 // pred_check
          %p231 = pneg %p55
        $region42: #{tpu_custom_call.1} parent=39 // pred_check_branch
          %233 = sbr.rel (%p231) target = $region44
        $region43: #{tpu_custom_call.1} parent=39 // pred_region
          %234 = dma.done %s227, 1024
        $region44: #{tpu_custom_call.1} parent=39 // pred_fallthru
          _
        %s235 = sand.u32 %s42, 1
        %s236 = scalar_lea.sflag [#allocation4], %s235
        %s237 = sand.u32 %s42, 1
        %s238 = smul.addr %s237, 64
        %s239 = scalar_lea.vmem [#allocation3], %s238
        %p240 = pneg %p55
        %p241 = pneg %p52
        %p242 = pneg %p76
        %p243 = pneg %p73
        %p244 = pneg %p97
        %p245 = pneg %p94
        %p246 = pneg %p118
        %p247 = pneg %p115
        %p248 = pneg %p139
        %p249 = pneg %p136
        %p250 = pneg %p167
        %p251 = pneg %p164
        %s252 = sand.u32 %s154, 1
        %s253 = scalar_lea.sflag [#allocation5], %s252
        %s254 = sand.u32 %s154, 1
        %s255 = smul.addr %s254, 128
        %s256 = scalar_lea.vmem [#allocation6], %s255
        %s257 = smul.u32 2, %s27
        %p258 = scmp.eq.s32.totalorder %s27, 0
        // Predicated region
        $region45: #{tpu_custom_call.1} parent=39 // pred_check
          %p259 = pneg %p258
        $region46: #{tpu_custom_call.1} parent=39 // pred_check_branch
          %261 = sbr.rel (%p259) target = $region48
        $region47: #{tpu_custom_call.1} parent=39 // pred_region
          %vm262 = vcmask 146432
          %263 = vst.msk [vmem:[#allocation2] sm:$0xff] %vm262, 0.0
          %264 = vst.msk [vmem:[#allocation2 + $0x8] sm:$0xff] %vm262, 0.0
          %vm265 = vcmask 140288
          %266 = vst.msk [vmem:[#allocation2 + $0x10] sm:$0x3] %vm265, 0.0
          %267 = vst.msk [vmem:[#allocation2 + $0x18] sm:$0xff] %vm262, 0.0
          %268 = vst.msk [vmem:[#allocation2 + $0x20] sm:$0xff] %vm262, 0.0
          %269 = vst.msk [vmem:[#allocation2 + $0x28] sm:$0x3] %vm265, 0.0
          %270 = vst.msk [vmem:[#allocation2 + $0x30] sm:$0xff] %vm262, 0.0
          %271 = vst.msk [vmem:[#allocation2 + $0x38] sm:$0xff] %vm262, 0.0
          %272 = vst.msk [vmem:[#allocation2 + $0x40] sm:$0x3] %vm265, 0.0
          %273 = vst.msk [vmem:[#allocation2 + $0x48] sm:$0xff] %vm262, 0.0
          %274 = vst.msk [vmem:[#allocation2 + $0x50] sm:$0xff] %vm262, 0.0
          %275 = vst.msk [vmem:[#allocation2 + $0x58] sm:$0x3] %vm265, 0.0
          %v276 = vld [vmem:[%s230] sm:$0xff]
          %v277 = vld [vmem:[%s230 + $0x8] sm:$0xff]
          %v278 = vld [vmem:[%s230 + $0x10] sm:$0xff]
          %v279 = vld [vmem:[%s230 + $0x18] sm:$0xff]
          %v280 = vld [vmem:[%s230 + $0x20] sm:$0xff]
          %v281 = vld [vmem:[%s230 + $0x28] sm:$0xff]
          %v282 = vld [vmem:[%s230 + $0x30] sm:$0xff]
          %v283 = vld [vmem:[%s230 + $0x38] sm:$0xff]
          %292 = vrot.lane.b32.xlu0 %v276, 1
          %v293 = vpop.permute.xlu0 %292
          %294 = vrot.lane.b32.xlu0 %v277, 1
          %v295 = vpop.permute.xlu0 %294
          %296 = vrot.lane.b32.xlu0 %v278, 1
          %v297 = vpop.permute.xlu0 %296
          %298 = vrot.lane.b32.xlu0 %v279, 1
          %v299 = vpop.permute.xlu0 %298
          %300 = vrot.lane.b32.xlu0 %v280, 1
          %v301 = vpop.permute.xlu0 %300
          %302 = vrot.lane.b32.xlu0 %v281, 1
          %v303 = vpop.permute.xlu0 %302
          %304 = vrot.lane.b32.xlu0 %v282, 1
          %v305 = vpop.permute.xlu0 %304
          %306 = vrot.lane.b32.xlu0 %v283, 1
          %v307 = vpop.permute.xlu0 %306
          %vm316 = vcmask 138248
          %317 = vst.msk [vmem:[#allocation2 + $0x1] sm:$0xff] %vm316, %v293
          %318 = vst.msk [vmem:[#allocation2 + $0x9] sm:$0xff] %vm316, %v295
          %319 = vst.msk [vmem:[#allocation2 + $0x19] sm:$0xff] %vm316, %v297
          %320 = vst.msk [vmem:[#allocation2 + $0x21] sm:$0xff] %vm316, %v299
          %321 = vst.msk [vmem:[#allocation2 + $0x31] sm:$0xff] %vm316, %v301
          %322 = vst.msk [vmem:[#allocation2 + $0x39] sm:$0xff] %vm316, %v303
          %323 = vst.msk [vmem:[#allocation2 + $0x49] sm:$0xff] %vm316, %v305
          %324 = vst.msk [vmem:[#allocation2 + $0x51] sm:$0xff] %vm316, %v307
        $region48: #{tpu_custom_call.1} parent=39 // pred_fallthru
          _
        %s325 = smul.u32 %s27, 16
        %s326 = scalar_lea.vmem [#allocation2], %s325
        %v327 = vld [vmem:[%s326] sm:$0xff]
        %v328 = vld [vmem:[%s326 + $0x8] sm:$0xff]
        %v329 = vld [vmem:[%s326 + $0x18] sm:$0xff]
        %v330 = vld [vmem:[%s326 + $0x20] sm:$0xff]
        %v331 = vld [vmem:[%s326 + $0x30] sm:$0xff]
        %v332 = vld [vmem:[%s326 + $0x38] sm:$0xff]
        %v333 = vld [vmem:[%s326 + $0x48] sm:$0xff]
        %v334 = vld [vmem:[%s326 + $0x50] sm:$0xff]
        %v335 = vld [vmem:[%s1] sm:$0x1]
        %v336 = vld [vmem:[%s1 + $0x1] sm:$0x1]
        %v337 = vld [vmem:[%s1 + $0x2] sm:$0x1]
        %v338 = vld [vmem:[%s1 + $0x3] sm:$0x1]
        %v343 = vlaneseq
        %v344 = vshrl.u32 %v343, 7
        %v345 = vsub.s32 0, %v344
        %v346 = vrot.slane %v335, %v345
        %v347 = vlaneseq
        %v348 = vshrl.u32 %v347, 7
        %v349 = vsub.s32 0, %v348
        %v350 = vrot.slane %v336, %v349
        %v351 = vlaneseq
        %v352 = vshrl.u32 %v351, 7
        %v353 = vsub.s32 0, %v352
        %v354 = vrot.slane %v337, %v353
        %v355 = vlaneseq
        %v356 = vshrl.u32 %v355, 7
        %v357 = vsub.s32 0, %v356
        %v358 = vrot.slane %v338, %v357
        %359 = vset.pattern.permute.xlu0 0
        %360 = vperm.xlu0 %359, %v346
        %v361 = vpop.permute.xlu0 %360
        %363 = vset.pattern.permute.xlu0 0
        %364 = vperm.xlu0 %363, %v350
        %v365 = vpop.permute.xlu0 %364
        %367 = vset.pattern.permute.xlu0 0
        %368 = vperm.xlu0 %367, %v354
        %v369 = vpop.permute.xlu0 %368
        %371 = vset.pattern.permute.xlu0 0
        %372 = vperm.xlu0 %371, %v358
        %v373 = vpop.permute.xlu0 %372
        %v375 = vmul.f32 %v327, %v361
        %v376 = vmul.f32 %v328, %v361
        %v377 = vmul.f32 %v329, %v365
        %v378 = vmul.f32 %v330, %v365
        %v379 = vmul.f32 %v331, %v369
        %v380 = vmul.f32 %v332, %v369
        %v381 = vmul.f32 %v333, %v373
        %v382 = vmul.f32 %v334, %v373
        %v383 = vadd.f32 %v375, 0.0
        %v384 = vadd.f32 %v376, 0.0
        %v385 = vadd.f32 %v377, 0.0
        %v386 = vadd.f32 %v378, 0.0
        %v387 = vadd.f32 %v379, 0.0
        %v388 = vadd.f32 %v380, 0.0
        %v389 = vadd.f32 %v381, 0.0
        %v390 = vadd.f32 %v382, 0.0
        %s391 = scalar_lea.vmem %s1, 4
        %v392 = vld [vmem:[%s391] sm:$0x1]
        %v393 = vld [vmem:[%s391 + $0x1] sm:$0x1]
        %v394 = vld [vmem:[%s391 + $0x2] sm:$0x1]
        %v395 = vld [vmem:[%s391 + $0x3] sm:$0x1]
        %v400 = vlaneseq
        %v401 = vshrl.u32 %v400, 7
        %v402 = vsub.s32 0, %v401
        %v403 = vrot.slane %v392, %v402
        %v404 = vlaneseq
        %v405 = vshrl.u32 %v404, 7
        %v406 = vsub.s32 0, %v405
        %v407 = vrot.slane %v393, %v406
        %v408 = vlaneseq
        %v409 = vshrl.u32 %v408, 7
        %v410 = vsub.s32 0, %v409
        %v411 = vrot.slane %v394, %v410
        %v412 = vlaneseq
        %v413 = vshrl.u32 %v412, 7
        %v414 = vsub.s32 0, %v413
        %v415 = vrot.slane %v395, %v414
        %416 = vset.pattern.permute.xlu0 0
        %417 = vperm.xlu0 %416, %v403
        %v418 = vpop.permute.xlu0 %417
        %420 = vset.pattern.permute.xlu0 0
        %421 = vperm.xlu0 %420, %v407
        %v422 = vpop.permute.xlu0 %421
        %424 = vset.pattern.permute.xlu0 0
        %425 = vperm.xlu0 %424, %v411
        %v426 = vpop.permute.xlu0 %425
        %428 = vset.pattern.permute.xlu0 0
        %429 = vperm.xlu0 %428, %v415
        %v430 = vpop.permute.xlu0 %429
        %v432 = vmul.f32 %v327, %v418
        %v433 = vmul.f32 %v328, %v418
        %v434 = vmul.f32 %v329, %v422
        %v435 = vmul.f32 %v330, %v422
        %v436 = vmul.f32 %v331, %v426
        %v437 = vmul.f32 %v332, %v426
        %v438 = vmul.f32 %v333, %v430
        %v439 = vmul.f32 %v334, %v430
        %448 = vrot.lane.b32.xlu0 %v432, 127
        %v449 = vpop.permute.xlu0 %448
        %450 = vrot.lane.b32.xlu0 %v433, 127
        %v451 = vpop.permute.xlu0 %450
        %452 = vrot.lane.b32.xlu0 %v434, 127
        %v453 = vpop.permute.xlu0 %452
        %454 = vrot.lane.b32.xlu0 %v435, 127
        %v455 = vpop.permute.xlu0 %454
        %456 = vrot.lane.b32.xlu0 %v436, 127
        %v457 = vpop.permute.xlu0 %456
        %458 = vrot.lane.b32.xlu0 %v437, 127
        %v459 = vpop.permute.xlu0 %458
        %460 = vrot.lane.b32.xlu0 %v438, 127
        %v461 = vpop.permute.xlu0 %460
        %462 = vrot.lane.b32.xlu0 %v439, 127
        %v463 = vpop.permute.xlu0 %462
        %v472 = vadd.f32 %v383, %v449
        %v473 = vadd.f32 %v384, %v451
        %v474 = vadd.f32 %v385, %v453
        %v475 = vadd.f32 %v386, %v455
        %v476 = vadd.f32 %v387, %v457
        %v477 = vadd.f32 %v388, %v459
        %v478 = vadd.f32 %v389, %v461
        %v479 = vadd.f32 %v390, %v463
        %s480 = scalar_lea.vmem %s1, 8
        %v481 = vld [vmem:[%s480] sm:$0x1]
        %v482 = vld [vmem:[%s480 + $0x1] sm:$0x1]
        %v483 = vld [vmem:[%s480 + $0x2] sm:$0x1]
        %v484 = vld [vmem:[%s480 + $0x3] sm:$0x1]
        %v489 = vlaneseq
        %v490 = vshrl.u32 %v489, 7
        %v491 = vsub.s32 0, %v490
        %v492 = vrot.slane %v481, %v491
        %v493 = vlaneseq
        %v494 = vshrl.u32 %v493, 7
        %v495 = vsub.s32 0, %v494
        %v496 = vrot.slane %v482, %v495
        %v497 = vlaneseq
        %v498 = vshrl.u32 %v497, 7
        %v499 = vsub.s32 0, %v498
        %v500 = vrot.slane %v483, %v499
        %v501 = vlaneseq
        %v502 = vshrl.u32 %v501, 7
        %v503 = vsub.s32 0, %v502
        %v504 = vrot.slane %v484, %v503
        %505 = vset.pattern.permute.xlu0 0
        %506 = vperm.xlu0 %505, %v492
        %v507 = vpop.permute.xlu0 %506
        %509 = vset.pattern.permute.xlu0 0
        %510 = vperm.xlu0 %509, %v496
        %v511 = vpop.permute.xlu0 %510
        %513 = vset.pattern.permute.xlu0 0
        %514 = vperm.xlu0 %513, %v500
        %v515 = vpop.permute.xlu0 %514
        %517 = vset.pattern.permute.xlu0 0
        %518 = vperm.xlu0 %517, %v504
        %v519 = vpop.permute.xlu0 %518
        %v521 = vmul.f32 %v327, %v507
        %v522 = vmul.f32 %v328, %v507
        %v523 = vmul.f32 %v329, %v511
        %v524 = vmul.f32 %v330, %v511
        %v525 = vmul.f32 %v331, %v515
        %v526 = vmul.f32 %v332, %v515
        %v527 = vmul.f32 %v333, %v519
        %v528 = vmul.f32 %v334, %v519
        %537 = vrot.lane.b32.xlu0 %v521, 126
        %v538 = vpop.permute.xlu0 %537
        %539 = vrot.lane.b32.xlu0 %v522, 126
        %v540 = vpop.permute.xlu0 %539
        %541 = vrot.lane.b32.xlu0 %v523, 126
        %v542 = vpop.permute.xlu0 %541
        %543 = vrot.lane.b32.xlu0 %v524, 126
        %v544 = vpop.permute.xlu0 %543
        %545 = vrot.lane.b32.xlu0 %v525, 126
        %v546 = vpop.permute.xlu0 %545
        %547 = vrot.lane.b32.xlu0 %v526, 126
        %v548 = vpop.permute.xlu0 %547
        %549 = vrot.lane.b32.xlu0 %v527, 126
        %v550 = vpop.permute.xlu0 %549
        %551 = vrot.lane.b32.xlu0 %v528, 126
        %v552 = vpop.permute.xlu0 %551
        %v561 = vadd.f32 %v472, %v538
        %v562 = vadd.f32 %v473, %v540
        %v563 = vadd.f32 %v474, %v542
        %v564 = vadd.f32 %v475, %v544
        %v565 = vadd.f32 %v476, %v546
        %v566 = vadd.f32 %v477, %v548
        %v567 = vadd.f32 %v478, %v550
        %v568 = vadd.f32 %v479, %v552
        %s569 = sadd.s32 %s325, 1
        %s570 = scalar_lea.vmem [#allocation2], %s569
        %v571 = vld [vmem:[%s570] sm:$0xff]
        %v572 = vld [vmem:[%s570 + $0x8] sm:$0xff]
        %v573 = vld [vmem:[%s570 + $0x18] sm:$0xff]
        %v574 = vld [vmem:[%s570 + $0x20] sm:$0xff]
        %v575 = vld [vmem:[%s570 + $0x30] sm:$0xff]
        %v576 = vld [vmem:[%s570 + $0x38] sm:$0xff]
        %v577 = vld [vmem:[%s570 + $0x48] sm:$0xff]
        %v578 = vld [vmem:[%s570 + $0x50] sm:$0xff]
        %s579 = scalar_lea.vmem %s1, 12
        %v580 = vld [vmem:[%s579] sm:$0x1]
        %v581 = vld [vmem:[%s579 + $0x1] sm:$0x1]
        %v582 = vld [vmem:[%s579 + $0x2] sm:$0x1]
        %v583 = vld [vmem:[%s579 + $0x3] sm:$0x1]
        %v588 = vlaneseq
        %v589 = vshrl.u32 %v588, 7
        %v590 = vsub.s32 0, %v589
        %v591 = vrot.slane %v580, %v590
        %v592 = vlaneseq
        %v593 = vshrl.u32 %v592, 7
        %v594 = vsub.s32 0, %v593
        %v595 = vrot.slane %v581, %v594
        %v596 = vlaneseq
        %v597 = vshrl.u32 %v596, 7
        %v598 = vsub.s32 0, %v597
        %v599 = vrot.slane %v582, %v598
        %v600 = vlaneseq
        %v601 = vshrl.u32 %v600, 7
        %v602 = vsub.s32 0, %v601
        %v603 = vrot.slane %v583, %v602
        %604 = vset.pattern.permute.xlu0 0
        %605 = vperm.xlu0 %604, %v591
        %v606 = vpop.permute.xlu0 %605
        %608 = vset.pattern.permute.xlu0 0
        %609 = vperm.xlu0 %608, %v595
        %v610 = vpop.permute.xlu0 %609
        %612 = vset.pattern.permute.xlu0 0
        %613 = vperm.xlu0 %612, %v599
        %v614 = vpop.permute.xlu0 %613
        %616 = vset.pattern.permute.xlu0 0
        %617 = vperm.xlu0 %616, %v603
        %v618 = vpop.permute.xlu0 %617
        %v620 = vmul.f32 %v571, %v606
        %v621 = vmul.f32 %v572, %v606
        %v622 = vmul.f32 %v573, %v610
        %v623 = vmul.f32 %v574, %v610
        %v624 = vmul.f32 %v575, %v614
        %v625 = vmul.f32 %v576, %v614
        %v626 = vmul.f32 %v577, %v618
        %v627 = vmul.f32 %v578, %v618
        %v628 = vadd.f32 %v561, %v620
        %v629 = vadd.f32 %v562, %v621
        %v630 = vadd.f32 %v563, %v622
        %v631 = vadd.f32 %v564, %v623
        %v632 = vadd.f32 %v565, %v624
        %v633 = vadd.f32 %v566, %v625
        %v634 = vadd.f32 %v567, %v626
        %v635 = vadd.f32 %v568, %v627
        %s636 = scalar_lea.vmem %s1, 16
        %v637 = vld [vmem:[%s636] sm:$0x1]
        %v638 = vld [vmem:[%s636 + $0x1] sm:$0x1]
        %v639 = vld [vmem:[%s636 + $0x2] sm:$0x1]
        %v640 = vld [vmem:[%s636 + $0x3] sm:$0x1]
        %v645 = vlaneseq
        %v646 = vshrl.u32 %v645, 7
        %v647 = vsub.s32 0, %v646
        %v648 = vrot.slane %v637, %v647
        %v649 = vlaneseq
        %v650 = vshrl.u32 %v649, 7
        %v651 = vsub.s32 0, %v650
        %v652 = vrot.slane %v638, %v651
        %v653 = vlaneseq
        %v654 = vshrl.u32 %v653, 7
        %v655 = vsub.s32 0, %v654
        %v656 = vrot.slane %v639, %v655
        %v657 = vlaneseq
        %v658 = vshrl.u32 %v657, 7
        %v659 = vsub.s32 0, %v658
        %v660 = vrot.slane %v640, %v659
        %661 = vset.pattern.permute.xlu0 0
        %662 = vperm.xlu0 %661, %v648
        %v663 = vpop.permute.xlu0 %662
        %665 = vset.pattern.permute.xlu0 0
        %666 = vperm.xlu0 %665, %v652
        %v667 = vpop.permute.xlu0 %666
        %669 = vset.pattern.permute.xlu0 0
        %670 = vperm.xlu0 %669, %v656
        %v671 = vpop.permute.xlu0 %670
        %673 = vset.pattern.permute.xlu0 0
        %674 = vperm.xlu0 %673, %v660
        %v675 = vpop.permute.xlu0 %674
        %v677 = vmul.f32 %v571, %v663
        %v678 = vmul.f32 %v572, %v663
        %v679 = vmul.f32 %v573, %v667
        %v680 = vmul.f32 %v574, %v667
        %v681 = vmul.f32 %v575, %v671
        %v682 = vmul.f32 %v576, %v671
        %v683 = vmul.f32 %v577, %v675
        %v684 = vmul.f32 %v578, %v675
        %693 = vrot.lane.b32.xlu0 %v677, 127
        %v694 = vpop.permute.xlu0 %693
        %695 = vrot.lane.b32.xlu0 %v678, 127
        %v696 = vpop.permute.xlu0 %695
        %697 = vrot.lane.b32.xlu0 %v679, 127
        %v698 = vpop.permute.xlu0 %697
        %699 = vrot.lane.b32.xlu0 %v680, 127
        %v700 = vpop.permute.xlu0 %699
        %701 = vrot.lane.b32.xlu0 %v681, 127
        %v702 = vpop.permute.xlu0 %701
        %703 = vrot.lane.b32.xlu0 %v682, 127
        %v704 = vpop.permute.xlu0 %703
        %705 = vrot.lane.b32.xlu0 %v683, 127
        %v706 = vpop.permute.xlu0 %705
        %707 = vrot.lane.b32.xlu0 %v684, 127
        %v708 = vpop.permute.xlu0 %707
        %v717 = vadd.f32 %v628, %v694
        %v718 = vadd.f32 %v629, %v696
        %v719 = vadd.f32 %v630, %v698
        %v720 = vadd.f32 %v631, %v700
        %v721 = vadd.f32 %v632, %v702
        %v722 = vadd.f32 %v633, %v704
        %v723 = vadd.f32 %v634, %v706
        %v724 = vadd.f32 %v635, %v708
        %s725 = scalar_lea.vmem %s1, 20
        %v726 = vld [vmem:[%s725] sm:$0x1]
        %v727 = vld [vmem:[%s725 + $0x1] sm:$0x1]
        %v728 = vld [vmem:[%s725 + $0x2] sm:$0x1]
        %v729 = vld [vmem:[%s725 + $0x3] sm:$0x1]
        %v734 = vlaneseq
        %v735 = vshrl.u32 %v734, 7
        %v736 = vsub.s32 0, %v735
        %v737 = vrot.slane %v726, %v736
        %v738 = vlaneseq
        %v739 = vshrl.u32 %v738, 7
        %v740 = vsub.s32 0, %v739
        %v741 = vrot.slane %v727, %v740
        %v742 = vlaneseq
        %v743 = vshrl.u32 %v742, 7
        %v744 = vsub.s32 0, %v743
        %v745 = vrot.slane %v728, %v744
        %v746 = vlaneseq
        %v747 = vshrl.u32 %v746, 7
        %v748 = vsub.s32 0, %v747
        %v749 = vrot.slane %v729, %v748
        %750 = vset.pattern.permute.xlu0 0
        %751 = vperm.xlu0 %750, %v737
        %v752 = vpop.permute.xlu0 %751
        %754 = vset.pattern.permute.xlu0 0
        %755 = vperm.xlu0 %754, %v741
        %v756 = vpop.permute.xlu0 %755
        %758 = vset.pattern.permute.xlu0 0
        %759 = vperm.xlu0 %758, %v745
        %v760 = vpop.permute.xlu0 %759
        %762 = vset.pattern.permute.xlu0 0
        %763 = vperm.xlu0 %762, %v749
        %v764 = vpop.permute.xlu0 %763
        %v766 = vmul.f32 %v571, %v752
        %v767 = vmul.f32 %v572, %v752
        %v768 = vmul.f32 %v573, %v756
        %v769 = vmul.f32 %v574, %v756
        %v770 = vmul.f32 %v575, %v760
        %v771 = vmul.f32 %v576, %v760
        %v772 = vmul.f32 %v577, %v764
        %v773 = vmul.f32 %v578, %v764
        %782 = vrot.lane.b32.xlu0 %v766, 126
        %v783 = vpop.permute.xlu0 %782
        %784 = vrot.lane.b32.xlu0 %v767, 126
        %v785 = vpop.permute.xlu0 %784
        %786 = vrot.lane.b32.xlu0 %v768, 126
        %v787 = vpop.permute.xlu0 %786
        %788 = vrot.lane.b32.xlu0 %v769, 126
        %v789 = vpop.permute.xlu0 %788
        %790 = vrot.lane.b32.xlu0 %v770, 126
        %v791 = vpop.permute.xlu0 %790
        %792 = vrot.lane.b32.xlu0 %v771, 126
        %v793 = vpop.permute.xlu0 %792
        %794 = vrot.lane.b32.xlu0 %v772, 126
        %v795 = vpop.permute.xlu0 %794
        %796 = vrot.lane.b32.xlu0 %v773, 126
        %v797 = vpop.permute.xlu0 %796
        %v806 = vadd.f32 %v717, %v783
        %v807 = vadd.f32 %v718, %v785
        %v808 = vadd.f32 %v719, %v787
        %v809 = vadd.f32 %v720, %v789
        %v810 = vadd.f32 %v721, %v791
        %v811 = vadd.f32 %v722, %v793
        %v812 = vadd.f32 %v723, %v795
        %v813 = vadd.f32 %v724, %v797
        %s814 = sadd.s32 %s325, 2
        %s815 = scalar_lea.vmem [#allocation2], %s814
        %v816 = vld [vmem:[%s815] sm:$0xff]
        %v817 = vld [vmem:[%s815 + $0x8] sm:$0xff]
        %v818 = vld [vmem:[%s815 + $0x18] sm:$0xff]
        %v819 = vld [vmem:[%s815 + $0x20] sm:$0xff]
        %v820 = vld [vmem:[%s815 + $0x30] sm:$0xff]
        %v821 = vld [vmem:[%s815 + $0x38] sm:$0xff]
        %v822 = vld [vmem:[%s815 + $0x48] sm:$0xff]
        %v823 = vld [vmem:[%s815 + $0x50] sm:$0xff]
        %s824 = scalar_lea.vmem %s1, 24
        %v825 = vld [vmem:[%s824] sm:$0x1]
        %v826 = vld [vmem:[%s824 + $0x1] sm:$0x1]
        %v827 = vld [vmem:[%s824 + $0x2] sm:$0x1]
        %v828 = vld [vmem:[%s824 + $0x3] sm:$0x1]
        %v833 = vlaneseq
        %v834 = vshrl.u32 %v833, 7
        %v835 = vsub.s32 0, %v834
        %v836 = vrot.slane %v825, %v835
        %v837 = vlaneseq
        %v838 = vshrl.u32 %v837, 7
        %v839 = vsub.s32 0, %v838
        %v840 = vrot.slane %v826, %v839
        %v841 = vlaneseq
        %v842 = vshrl.u32 %v841, 7
        %v843 = vsub.s32 0, %v842
        %v844 = vrot.slane %v827, %v843
        %v845 = vlaneseq
        %v846 = vshrl.u32 %v845, 7
        %v847 = vsub.s32 0, %v846
        %v848 = vrot.slane %v828, %v847
        %849 = vset.pattern.permute.xlu0 0
        %850 = vperm.xlu0 %849, %v836
        %v851 = vpop.permute.xlu0 %850
        %853 = vset.pattern.permute.xlu0 0
        %854 = vperm.xlu0 %853, %v840
        %v855 = vpop.permute.xlu0 %854
        %857 = vset.pattern.permute.xlu0 0
        %858 = vperm.xlu0 %857, %v844
        %v859 = vpop.permute.xlu0 %858
        %861 = vset.pattern.permute.xlu0 0
        %862 = vperm.xlu0 %861, %v848
        %v863 = vpop.permute.xlu0 %862
        %v865 = vmul.f32 %v816, %v851
        %v866 = vmul.f32 %v817, %v851
        %v867 = vmul.f32 %v818, %v855
        %v868 = vmul.f32 %v819, %v855
        %v869 = vmul.f32 %v820, %v859
        %v870 = vmul.f32 %v821, %v859
        %v871 = vmul.f32 %v822, %v863
        %v872 = vmul.f32 %v823, %v863
        %v873 = vadd.f32 %v806, %v865
        %v874 = vadd.f32 %v807, %v866
        %v875 = vadd.f32 %v808, %v867
        %v876 = vadd.f32 %v809, %v868
        %v877 = vadd.f32 %v810, %v869
        %v878 = vadd.f32 %v811, %v870
        %v879 = vadd.f32 %v812, %v871
        %v880 = vadd.f32 %v813, %v872
        %s881 = scalar_lea.vmem %s1, 28
        %v882 = vld [vmem:[%s881] sm:$0x1]
        %v883 = vld [vmem:[%s881 + $0x1] sm:$0x1]
        %v884 = vld [vmem:[%s881 + $0x2] sm:$0x1]
        %v885 = vld [vmem:[%s881 + $0x3] sm:$0x1]
        %v890 = vlaneseq
        %v891 = vshrl.u32 %v890, 7
        %v892 = vsub.s32 0, %v891
        %v893 = vrot.slane %v882, %v892
        %v894 = vlaneseq
        %v895 = vshrl.u32 %v894, 7
        %v896 = vsub.s32 0, %v895
        %v897 = vrot.slane %v883, %v896
        %v898 = vlaneseq
        %v899 = vshrl.u32 %v898, 7
        %v900 = vsub.s32 0, %v899
        %v901 = vrot.slane %v884, %v900
        %v902 = vlaneseq
        %v903 = vshrl.u32 %v902, 7
        %v904 = vsub.s32 0, %v903
        %v905 = vrot.slane %v885, %v904
        %906 = vset.pattern.permute.xlu0 0
        %907 = vperm.xlu0 %906, %v893
        %v908 = vpop.permute.xlu0 %907
        %910 = vset.pattern.permute.xlu0 0
        %911 = vperm.xlu0 %910, %v897
        %v912 = vpop.permute.xlu0 %911
        %914 = vset.pattern.permute.xlu0 0
        %915 = vperm.xlu0 %914, %v901
        %v916 = vpop.permute.xlu0 %915
        %918 = vset.pattern.permute.xlu0 0
        %919 = vperm.xlu0 %918, %v905
        %v920 = vpop.permute.xlu0 %919
        %v922 = vmul.f32 %v816, %v908
        %v923 = vmul.f32 %v817, %v908
        %v924 = vmul.f32 %v818, %v912
        %v925 = vmul.f32 %v819, %v912
        %v926 = vmul.f32 %v820, %v916
        %v927 = vmul.f32 %v821, %v916
        %v928 = vmul.f32 %v822, %v920
        %v929 = vmul.f32 %v823, %v920
        %938 = vrot.lane.b32.xlu0 %v922, 127
        %v939 = vpop.permute.xlu0 %938
        %940 = vrot.lane.b32.xlu0 %v923, 127
        %v941 = vpop.permute.xlu0 %940
        %942 = vrot.lane.b32.xlu0 %v924, 127
        %v943 = vpop.permute.xlu0 %942
        %944 = vrot.lane.b32.xlu0 %v925, 127
        %v945 = vpop.permute.xlu0 %944
        %946 = vrot.lane.b32.xlu0 %v926, 127
        %v947 = vpop.permute.xlu0 %946
        %948 = vrot.lane.b32.xlu0 %v927, 127
        %v949 = vpop.permute.xlu0 %948
        %950 = vrot.lane.b32.xlu0 %v928, 127
        %v951 = vpop.permute.xlu0 %950
        %952 = vrot.lane.b32.xlu0 %v929, 127
        %v953 = vpop.permute.xlu0 %952
        %v962 = vadd.f32 %v873, %v939
        %v963 = vadd.f32 %v874, %v941
        %v964 = vadd.f32 %v875, %v943
        %v965 = vadd.f32 %v876, %v945
        %v966 = vadd.f32 %v877, %v947
        %v967 = vadd.f32 %v878, %v949
        %v968 = vadd.f32 %v879, %v951
        %v969 = vadd.f32 %v880, %v953
        %s970 = scalar_lea.vmem %s1, 32
        %v971 = vld [vmem:[%s970] sm:$0x1]
        %v972 = vld [vmem:[%s970 + $0x1] sm:$0x1]
        %v973 = vld [vmem:[%s970 + $0x2] sm:$0x1]
        %v974 = vld [vmem:[%s970 + $0x3] sm:$0x1]
        %v979 = vlaneseq
        %v980 = vshrl.u32 %v979, 7
        %v981 = vsub.s32 0, %v980
        %v982 = vrot.slane %v971, %v981
        %v983 = vlaneseq
        %v984 = vshrl.u32 %v983, 7
        %v985 = vsub.s32 0, %v984
        %v986 = vrot.slane %v972, %v985
        %v987 = vlaneseq
        %v988 = vshrl.u32 %v987, 7
        %v989 = vsub.s32 0, %v988
        %v990 = vrot.slane %v973, %v989
        %v991 = vlaneseq
        %v992 = vshrl.u32 %v991, 7
        %v993 = vsub.s32 0, %v992
        %v994 = vrot.slane %v974, %v993
        %995 = vset.pattern.permute.xlu0 0
        %996 = vperm.xlu0 %995, %v982
        %v997 = vpop.permute.xlu0 %996
        %999 = vset.pattern.permute.xlu0 0
        %1000 = vperm.xlu0 %999, %v986
        %v1001 = vpop.permute.xlu0 %1000
        %1003 = vset.pattern.permute.xlu0 0
        %1004 = vperm.xlu0 %1003, %v990
        %v1005 = vpop.permute.xlu0 %1004
        %1007 = vset.pattern.permute.xlu0 0
        %1008 = vperm.xlu0 %1007, %v994
        %v1009 = vpop.permute.xlu0 %1008
        %v1011 = vmul.f32 %v816, %v997
        %v1012 = vmul.f32 %v817, %v997
        %v1013 = vmul.f32 %v818, %v1001
        %v1014 = vmul.f32 %v819, %v1001
        %v1015 = vmul.f32 %v820, %v1005
        %v1016 = vmul.f32 %v821, %v1005
        %v1017 = vmul.f32 %v822, %v1009
        %v1018 = vmul.f32 %v823, %v1009
        %1027 = vrot.lane.b32.xlu0 %v1011, 126
        %v1028 = vpop.permute.xlu0 %1027
        %1029 = vrot.lane.b32.xlu0 %v1012, 126
        %v1030 = vpop.permute.xlu0 %1029
        %1031 = vrot.lane.b32.xlu0 %v1013, 126
        %v1032 = vpop.permute.xlu0 %1031
        %1033 = vrot.lane.b32.xlu0 %v1014, 126
        %v1034 = vpop.permute.xlu0 %1033
        %1035 = vrot.lane.b32.xlu0 %v1015, 126
        %v1036 = vpop.permute.xlu0 %1035
        %1037 = vrot.lane.b32.xlu0 %v1016, 126
        %v1038 = vpop.permute.xlu0 %1037
        %1039 = vrot.lane.b32.xlu0 %v1017, 126
        %v1040 = vpop.permute.xlu0 %1039
        %1041 = vrot.lane.b32.xlu0 %v1018, 126
        %v1042 = vpop.permute.xlu0 %1041
        %v1051 = vadd.f32 %v962, %v1028
        %v1052 = vadd.f32 %v963, %v1030
        %v1053 = vadd.f32 %v964, %v1032
        %v1054 = vadd.f32 %v965, %v1034
        %v1055 = vadd.f32 %v966, %v1036
        %v1056 = vadd.f32 %v967, %v1038
        %v1057 = vadd.f32 %v968, %v1040
        %v1058 = vadd.f32 %v969, %v1042
        %v1059 = vld [vmem:[%s2] sm:$0x1]
        %v1060 = vld [vmem:[%s2 + $0x1] sm:$0x1]
        %v1061 = vld [vmem:[%s2 + $0x2] sm:$0x1]
        %v1062 = vld [vmem:[%s2 + $0x3] sm:$0x1]
        %v1067 = vlaneseq
        %v1068 = vshrl.u32 %v1067, 7
        %v1069 = vsub.s32 0, %v1068
        %v1070 = vrot.slane %v1059, %v1069
        %v1071 = vlaneseq
        %v1072 = vshrl.u32 %v1071, 7
        %v1073 = vsub.s32 0, %v1072
        %v1074 = vrot.slane %v1060, %v1073
        %v1075 = vlaneseq
        %v1076 = vshrl.u32 %v1075, 7
        %v1077 = vsub.s32 0, %v1076
        %v1078 = vrot.slane %v1061, %v1077
        %v1079 = vlaneseq
        %v1080 = vshrl.u32 %v1079, 7
        %v1081 = vsub.s32 0, %v1080
        %v1082 = vrot.slane %v1062, %v1081
        %1083 = vset.pattern.permute.xlu0 0
        %1084 = vperm.xlu0 %1083, %v1070
        %v1085 = vpop.permute.xlu0 %1084
        %1087 = vset.pattern.permute.xlu0 0
        %1088 = vperm.xlu0 %1087, %v1074
        %v1089 = vpop.permute.xlu0 %1088
        %1091 = vset.pattern.permute.xlu0 0
        %1092 = vperm.xlu0 %1091, %v1078
        %v1093 = vpop.permute.xlu0 %1092
        %1095 = vset.pattern.permute.xlu0 0
        %1096 = vperm.xlu0 %1095, %v1082
        %v1097 = vpop.permute.xlu0 %1096
        %v1099 = vadd.f32 %v1051, %v1085
        %v1100 = vadd.f32 %v1052, %v1085
        %v1101 = vadd.f32 %v1053, %v1089
        %v1102 = vadd.f32 %v1054, %v1089
        %v1103 = vadd.f32 %v1055, %v1093
        %v1104 = vadd.f32 %v1056, %v1093
        %v1105 = vadd.f32 %v1057, %v1097
        %v1106 = vadd.f32 %v1058, %v1097
        %v1107 = vmax.f32 %v1099, 0.0
        %v1108 = vmax.f32 %v1100, 0.0
        %v1109 = vmax.f32 %v1101, 0.0
        %v1110 = vmax.f32 %v1102, 0.0
        %v1111 = vmax.f32 %v1103, 0.0
        %v1112 = vmax.f32 %v1104, 0.0
        %v1113 = vmax.f32 %v1105, 0.0
        %v1114 = vmax.f32 %v1106, 0.0
        %v1115 = vld [vmem:[%s3] sm:$0x1]
        %v1116 = vld [vmem:[%s3 + $0x1] sm:$0x1]
        %v1117 = vld [vmem:[%s3 + $0x2] sm:$0x1]
        %v1118 = vld [vmem:[%s3 + $0x3] sm:$0x1]
        %v1119 = vld [vmem:[%s3 + $0x4] sm:$0x1]
        %v1120 = vld [vmem:[%s3 + $0x5] sm:$0x1]
        %v1121 = vld [vmem:[%s3 + $0x6] sm:$0x1]
        %v1122 = vld [vmem:[%s3 + $0x7] sm:$0x1]
        %v1131 = vlaneseq
        %v1132 = vshrl.u32 %v1131, 7
        %v1133 = vsub.s32 0, %v1132
        %v1134 = vrot.slane %v1115, %v1133
        %v1135 = vlaneseq
        %v1136 = vshrl.u32 %v1135, 7
        %v1137 = vsub.s32 0, %v1136
        %v1138 = vrot.slane %v1116, %v1137
        %v1139 = vlaneseq
        %v1140 = vshrl.u32 %v1139, 7
        %v1141 = vsub.s32 0, %v1140
        %v1142 = vrot.slane %v1117, %v1141
        %v1143 = vlaneseq
        %v1144 = vshrl.u32 %v1143, 7
        %v1145 = vsub.s32 0, %v1144
        %v1146 = vrot.slane %v1118, %v1145
        %v1147 = vlaneseq
        %v1148 = vshrl.u32 %v1147, 7
        %v1149 = vsub.s32 0, %v1148
        %v1150 = vrot.slane %v1119, %v1149
        %v1151 = vlaneseq
        %v1152 = vshrl.u32 %v1151, 7
        %v1153 = vsub.s32 0, %v1152
        %v1154 = vrot.slane %v1120, %v1153
        %v1155 = vlaneseq
        %v1156 = vshrl.u32 %v1155, 7
        %v1157 = vsub.s32 0, %v1156
        %v1158 = vrot.slane %v1121, %v1157
        %v1159 = vlaneseq
        %v1160 = vshrl.u32 %v1159, 7
        %v1161 = vsub.s32 0, %v1160
        %v1162 = vrot.slane %v1122, %v1161
        %1163 = vset.pattern.permute.xlu0 0
        %1164 = vperm.xlu0 %1163, %v1134
        %v1165 = vpop.permute.xlu0 %1164
        %1167 = vset.pattern.permute.xlu0 0
        %1168 = vperm.xlu0 %1167, %v1138
        %v1169 = vpop.permute.xlu0 %1168
        %1171 = vset.pattern.permute.xlu0 0
        %1172 = vperm.xlu0 %1171, %v1142
        %v1173 = vpop.permute.xlu0 %1172
        %1175 = vset.pattern.permute.xlu0 0
        %1176 = vperm.xlu0 %1175, %v1146
        %v1177 = vpop.permute.xlu0 %1176
        %1179 = vset.pattern.permute.xlu0 0
        %1180 = vperm.xlu0 %1179, %v1150
        %v1181 = vpop.permute.xlu0 %1180
        %1183 = vset.pattern.permute.xlu0 0
        %1184 = vperm.xlu0 %1183, %v1154
        %v1185 = vpop.permute.xlu0 %1184
        %1187 = vset.pattern.permute.xlu0 0
        %1188 = vperm.xlu0 %1187, %v1158
        %v1189 = vpop.permute.xlu0 %1188
        %1191 = vset.pattern.permute.xlu0 0
        %1192 = vperm.xlu0 %1191, %v1162
        %v1193 = vpop.permute.xlu0 %1192
        %v1195 = vmul.f32 %v1107, %v1165
        %v1196 = vmul.f32 %v1108, %v1165
        %v1197 = vmul.f32 %v1107, %v1169
        %v1198 = vmul.f32 %v1108, %v1169
        %v1199 = vmul.f32 %v1107, %v1173
        %v1200 = vmul.f32 %v1108, %v1173
        %v1201 = vmul.f32 %v1107, %v1177
        %v1202 = vmul.f32 %v1108, %v1177
        %v1203 = vmul.f32 %v1107, %v1181
        %v1204 = vmul.f32 %v1108, %v1181
        %v1205 = vmul.f32 %v1107, %v1185
        %v1206 = vmul.f32 %v1108, %v1185
        %v1207 = vmul.f32 %v1107, %v1189
        %v1208 = vmul.f32 %v1108, %v1189
        %v1209 = vmul.f32 %v1107, %v1193
        %v1210 = vmul.f32 %v1108, %v1193
        %v1211 = vadd.f32 %v1195, 0.0
        %v1212 = vadd.f32 %v1196, 0.0
        %v1213 = vadd.f32 %v1197, 0.0
        %v1214 = vadd.f32 %v1198, 0.0
        %v1215 = vadd.f32 %v1199, 0.0
        %v1216 = vadd.f32 %v1200, 0.0
        %v1217 = vadd.f32 %v1201, 0.0
        %v1218 = vadd.f32 %v1202, 0.0
        %v1219 = vadd.f32 %v1203, 0.0
        %v1220 = vadd.f32 %v1204, 0.0
        %v1221 = vadd.f32 %v1205, 0.0
        %v1222 = vadd.f32 %v1206, 0.0
        %v1223 = vadd.f32 %v1207, 0.0
        %v1224 = vadd.f32 %v1208, 0.0
        %v1225 = vadd.f32 %v1209, 0.0
        %v1226 = vadd.f32 %v1210, 0.0
        %s1227 = scalar_lea.vmem %s3, 8
        %v1228 = vld [vmem:[%s1227] sm:$0x1]
        %v1229 = vld [vmem:[%s1227 + $0x1] sm:$0x1]
        %v1230 = vld [vmem:[%s1227 + $0x2] sm:$0x1]
        %v1231 = vld [vmem:[%s1227 + $0x3] sm:$0x1]
        %v1232 = vld [vmem:[%s1227 + $0x4] sm:$0x1]
        %v1233 = vld [vmem:[%s1227 + $0x5] sm:$0x1]
        %v1234 = vld [vmem:[%s1227 + $0x6] sm:$0x1]
        %v1235 = vld [vmem:[%s1227 + $0x7] sm:$0x1]
        %v1244 = vlaneseq
        %v1245 = vshrl.u32 %v1244, 7
        %v1246 = vsub.s32 0, %v1245
        %v1247 = vrot.slane %v1228, %v1246
        %v1248 = vlaneseq
        %v1249 = vshrl.u32 %v1248, 7
        %v1250 = vsub.s32 0, %v1249
        %v1251 = vrot.slane %v1229, %v1250
        %v1252 = vlaneseq
        %v1253 = vshrl.u32 %v1252, 7
        %v1254 = vsub.s32 0, %v1253
        %v1255 = vrot.slane %v1230, %v1254
        %v1256 = vlaneseq
        %v1257 = vshrl.u32 %v1256, 7
        %v1258 = vsub.s32 0, %v1257
        %v1259 = vrot.slane %v1231, %v1258
        %v1260 = vlaneseq
        %v1261 = vshrl.u32 %v1260, 7
        %v1262 = vsub.s32 0, %v1261
        %v1263 = vrot.slane %v1232, %v1262
        %v1264 = vlaneseq
        %v1265 = vshrl.u32 %v1264, 7
        %v1266 = vsub.s32 0, %v1265
        %v1267 = vrot.slane %v1233, %v1266
        %v1268 = vlaneseq
        %v1269 = vshrl.u32 %v1268, 7
        %v1270 = vsub.s32 0, %v1269
        %v1271 = vrot.slane %v1234, %v1270
        %v1272 = vlaneseq
        %v1273 = vshrl.u32 %v1272, 7
        %v1274 = vsub.s32 0, %v1273
        %v1275 = vrot.slane %v1235, %v1274
        %1276 = vset.pattern.permute.xlu0 0
        %1277 = vperm.xlu0 %1276, %v1247
        %v1278 = vpop.permute.xlu0 %1277
        %1280 = vset.pattern.permute.xlu0 0
        %1281 = vperm.xlu0 %1280, %v1251
        %v1282 = vpop.permute.xlu0 %1281
        %1284 = vset.pattern.permute.xlu0 0
        %1285 = vperm.xlu0 %1284, %v1255
        %v1286 = vpop.permute.xlu0 %1285
        %1288 = vset.pattern.permute.xlu0 0
        %1289 = vperm.xlu0 %1288, %v1259
        %v1290 = vpop.permute.xlu0 %1289
        %1292 = vset.pattern.permute.xlu0 0
        %1293 = vperm.xlu0 %1292, %v1263
        %v1294 = vpop.permute.xlu0 %1293
        %1296 = vset.pattern.permute.xlu0 0
        %1297 = vperm.xlu0 %1296, %v1267
        %v1298 = vpop.permute.xlu0 %1297
        %1300 = vset.pattern.permute.xlu0 0
        %1301 = vperm.xlu0 %1300, %v1271
        %v1302 = vpop.permute.xlu0 %1301
        %1304 = vset.pattern.permute.xlu0 0
        %1305 = vperm.xlu0 %1304, %v1275
        %v1306 = vpop.permute.xlu0 %1305
        %v1308 = vmul.f32 %v1109, %v1278
        %v1309 = vmul.f32 %v1110, %v1278
        %v1310 = vmul.f32 %v1109, %v1282
        %v1311 = vmul.f32 %v1110, %v1282
        %v1312 = vmul.f32 %v1109, %v1286
        %v1313 = vmul.f32 %v1110, %v1286
        %v1314 = vmul.f32 %v1109, %v1290
        %v1315 = vmul.f32 %v1110, %v1290
        %v1316 = vmul.f32 %v1109, %v1294
        %v1317 = vmul.f32 %v1110, %v1294
        %v1318 = vmul.f32 %v1109, %v1298
        %v1319 = vmul.f32 %v1110, %v1298
        %v1320 = vmul.f32 %v1109, %v1302
        %v1321 = vmul.f32 %v1110, %v1302
        %v1322 = vmul.f32 %v1109, %v1306
        %v1323 = vmul.f32 %v1110, %v1306
        %v1324 = vadd.f32 %v1211, %v1308
        %v1325 = vadd.f32 %v1212, %v1309
        %v1326 = vadd.f32 %v1213, %v1310
        %v1327 = vadd.f32 %v1214, %v1311
        %v1328 = vadd.f32 %v1215, %v1312
        %v1329 = vadd.f32 %v1216, %v1313
        %v1330 = vadd.f32 %v1217, %v1314
        %v1331 = vadd.f32 %v1218, %v1315
        %v1332 = vadd.f32 %v1219, %v1316
        %v1333 = vadd.f32 %v1220, %v1317
        %v1334 = vadd.f32 %v1221, %v1318
        %v1335 = vadd.f32 %v1222, %v1319
        %v1336 = vadd.f32 %v1223, %v1320
        %v1337 = vadd.f32 %v1224, %v1321
        %v1338 = vadd.f32 %v1225, %v1322
        %v1339 = vadd.f32 %v1226, %v1323
        %s1340 = scalar_lea.vmem %s3, 16
        %v1341 = vld [vmem:[%s1340] sm:$0x1]
        %v1342 = vld [vmem:[%s1340 + $0x1] sm:$0x1]
        %v1343 = vld [vmem:[%s1340 + $0x2] sm:$0x1]
        %v1344 = vld [vmem:[%s1340 + $0x3] sm:$0x1]
        %v1345 = vld [vmem:[%s1340 + $0x4] sm:$0x1]
        %v1346 = vld [vmem:[%s1340 + $0x5] sm:$0x1]
        %v1347 = vld [vmem:[%s1340 + $0x6] sm:$0x1]
        %v1348 = vld [vmem:[%s1340 + $0x7] sm:$0x1]
        %v1357 = vlaneseq
        %v1358 = vshrl.u32 %v1357, 7
        %v1359 = vsub.s32 0, %v1358
        %v1360 = vrot.slane %v1341, %v1359
        %v1361 = vlaneseq
        %v1362 = vshrl.u32 %v1361, 7
        %v1363 = vsub.s32 0, %v1362
        %v1364 = vrot.slane %v1342, %v1363
        %v1365 = vlaneseq
        %v1366 = vshrl.u32 %v1365, 7
        %v1367 = vsub.s32 0, %v1366
        %v1368 = vrot.slane %v1343, %v1367
        %v1369 = vlaneseq
        %v1370 = vshrl.u32 %v1369, 7
        %v1371 = vsub.s32 0, %v1370
        %v1372 = vrot.slane %v1344, %v1371
        %v1373 = vlaneseq
        %v1374 = vshrl.u32 %v1373, 7
        %v1375 = vsub.s32 0, %v1374
        %v1376 = vrot.slane %v1345, %v1375
        %v1377 = vlaneseq
        %v1378 = vshrl.u32 %v1377, 7
        %v1379 = vsub.s32 0, %v1378
        %v1380 = vrot.slane %v1346, %v1379
        %v1381 = vlaneseq
        %v1382 = vshrl.u32 %v1381, 7
        %v1383 = vsub.s32 0, %v1382
        %v1384 = vrot.slane %v1347, %v1383
        %v1385 = vlaneseq
        %v1386 = vshrl.u32 %v1385, 7
        %v1387 = vsub.s32 0, %v1386
        %v1388 = vrot.slane %v1348, %v1387
        %1389 = vset.pattern.permute.xlu0 0
        %1390 = vperm.xlu0 %1389, %v1360
        %v1391 = vpop.permute.xlu0 %1390
        %1393 = vset.pattern.permute.xlu0 0
        %1394 = vperm.xlu0 %1393, %v1364
        %v1395 = vpop.permute.xlu0 %1394
        %1397 = vset.pattern.permute.xlu0 0
        %1398 = vperm.xlu0 %1397, %v1368
        %v1399 = vpop.permute.xlu0 %1398
        %1401 = vset.pattern.permute.xlu0 0
        %1402 = vperm.xlu0 %1401, %v1372
        %v1403 = vpop.permute.xlu0 %1402
        %1405 = vset.pattern.permute.xlu0 0
        %1406 = vperm.xlu0 %1405, %v1376
        %v1407 = vpop.permute.xlu0 %1406
        %1409 = vset.pattern.permute.xlu0 0
        %1410 = vperm.xlu0 %1409, %v1380
        %v1411 = vpop.permute.xlu0 %1410
        %1413 = vset.pattern.permute.xlu0 0
        %1414 = vperm.xlu0 %1413, %v1384
        %v1415 = vpop.permute.xlu0 %1414
        %1417 = vset.pattern.permute.xlu0 0
        %1418 = vperm.xlu0 %1417, %v1388
        %v1419 = vpop.permute.xlu0 %1418
        %v1421 = vmul.f32 %v1111, %v1391
        %v1422 = vmul.f32 %v1112, %v1391
        %v1423 = vmul.f32 %v1111, %v1395
        %v1424 = vmul.f32 %v1112, %v1395
        %v1425 = vmul.f32 %v1111, %v1399
        %v1426 = vmul.f32 %v1112, %v1399
        %v1427 = vmul.f32 %v1111, %v1403
        %v1428 = vmul.f32 %v1112, %v1403
        %v1429 = vmul.f32 %v1111, %v1407
        %v1430 = vmul.f32 %v1112, %v1407
        %v1431 = vmul.f32 %v1111, %v1411
        %v1432 = vmul.f32 %v1112, %v1411
        %v1433 = vmul.f32 %v1111, %v1415
        %v1434 = vmul.f32 %v1112, %v1415
        %v1435 = vmul.f32 %v1111, %v1419
        %v1436 = vmul.f32 %v1112, %v1419
        %v1437 = vadd.f32 %v1324, %v1421
        %v1438 = vadd.f32 %v1325, %v1422
        %v1439 = vadd.f32 %v1326, %v1423
        %v1440 = vadd.f32 %v1327, %v1424
        %v1441 = vadd.f32 %v1328, %v1425
        %v1442 = vadd.f32 %v1329, %v1426
        %v1443 = vadd.f32 %v1330, %v1427
        %v1444 = vadd.f32 %v1331, %v1428
        %v1445 = vadd.f32 %v1332, %v1429
        %v1446 = vadd.f32 %v1333, %v1430
        %v1447 = vadd.f32 %v1334, %v1431
        %v1448 = vadd.f32 %v1335, %v1432
        %v1449 = vadd.f32 %v1336, %v1433
        %v1450 = vadd.f32 %v1337, %v1434
        %v1451 = vadd.f32 %v1338, %v1435
        %v1452 = vadd.f32 %v1339, %v1436
        %s1453 = scalar_lea.vmem %s3, 24
        %v1454 = vld [vmem:[%s1453] sm:$0x1]
        %v1455 = vld [vmem:[%s1453 + $0x1] sm:$0x1]
        %v1456 = vld [vmem:[%s1453 + $0x2] sm:$0x1]
        %v1457 = vld [vmem:[%s1453 + $0x3] sm:$0x1]
        %v1458 = vld [vmem:[%s1453 + $0x4] sm:$0x1]
        %v1459 = vld [vmem:[%s1453 + $0x5] sm:$0x1]
        %v1460 = vld [vmem:[%s1453 + $0x6] sm:$0x1]
        %v1461 = vld [vmem:[%s1453 + $0x7] sm:$0x1]
        %v1470 = vlaneseq
        %v1471 = vshrl.u32 %v1470, 7
        %v1472 = vsub.s32 0, %v1471
        %v1473 = vrot.slane %v1454, %v1472
        %v1474 = vlaneseq
        %v1475 = vshrl.u32 %v1474, 7
        %v1476 = vsub.s32 0, %v1475
        %v1477 = vrot.slane %v1455, %v1476
        %v1478 = vlaneseq
        %v1479 = vshrl.u32 %v1478, 7
        %v1480 = vsub.s32 0, %v1479
        %v1481 = vrot.slane %v1456, %v1480
        %v1482 = vlaneseq
        %v1483 = vshrl.u32 %v1482, 7
        %v1484 = vsub.s32 0, %v1483
        %v1485 = vrot.slane %v1457, %v1484
        %v1486 = vlaneseq
        %v1487 = vshrl.u32 %v1486, 7
        %v1488 = vsub.s32 0, %v1487
        %v1489 = vrot.slane %v1458, %v1488
        %v1490 = vlaneseq
        %v1491 = vshrl.u32 %v1490, 7
        %v1492 = vsub.s32 0, %v1491
        %v1493 = vrot.slane %v1459, %v1492
        %v1494 = vlaneseq
        %v1495 = vshrl.u32 %v1494, 7
        %v1496 = vsub.s32 0, %v1495
        %v1497 = vrot.slane %v1460, %v1496
        %v1498 = vlaneseq
        %v1499 = vshrl.u32 %v1498, 7
        %v1500 = vsub.s32 0, %v1499
        %v1501 = vrot.slane %v1461, %v1500
        %1502 = vset.pattern.permute.xlu0 0
        %1503 = vperm.xlu0 %1502, %v1473
        %v1504 = vpop.permute.xlu0 %1503
        %1506 = vset.pattern.permute.xlu0 0
        %1507 = vperm.xlu0 %1506, %v1477
        %v1508 = vpop.permute.xlu0 %1507
        %1510 = vset.pattern.permute.xlu0 0
        %1511 = vperm.xlu0 %1510, %v1481
        %v1512 = vpop.permute.xlu0 %1511
        %1514 = vset.pattern.permute.xlu0 0
        %1515 = vperm.xlu0 %1514, %v1485
        %v1516 = vpop.permute.xlu0 %1515
        %1518 = vset.pattern.permute.xlu0 0
        %1519 = vperm.xlu0 %1518, %v1489
        %v1520 = vpop.permute.xlu0 %1519
        %1522 = vset.pattern.permute.xlu0 0
        %1523 = vperm.xlu0 %1522, %v1493
        %v1524 = vpop.permute.xlu0 %1523
        %1526 = vset.pattern.permute.xlu0 0
        %1527 = vperm.xlu0 %1526, %v1497
        %v1528 = vpop.permute.xlu0 %1527
        %1530 = vset.pattern.permute.xlu0 0
        %1531 = vperm.xlu0 %1530, %v1501
        %v1532 = vpop.permute.xlu0 %1531
        %v1534 = vmul.f32 %v1113, %v1504
        %v1535 = vmul.f32 %v1114, %v1504
        %v1536 = vmul.f32 %v1113, %v1508
        %v1537 = vmul.f32 %v1114, %v1508
        %v1538 = vmul.f32 %v1113, %v1512
        %v1539 = vmul.f32 %v1114, %v1512
        %v1540 = vmul.f32 %v1113, %v1516
        %v1541 = vmul.f32 %v1114, %v1516
        %v1542 = vmul.f32 %v1113, %v1520
        %v1543 = vmul.f32 %v1114, %v1520
        %v1544 = vmul.f32 %v1113, %v1524
        %v1545 = vmul.f32 %v1114, %v1524
        %v1546 = vmul.f32 %v1113, %v1528
        %v1547 = vmul.f32 %v1114, %v1528
        %v1548 = vmul.f32 %v1113, %v1532
        %v1549 = vmul.f32 %v1114, %v1532
        %v1550 = vadd.f32 %v1437, %v1534
        %v1551 = vadd.f32 %v1438, %v1535
        %v1552 = vadd.f32 %v1439, %v1536
        %v1553 = vadd.f32 %v1440, %v1537
        %v1554 = vadd.f32 %v1441, %v1538
        %v1555 = vadd.f32 %v1442, %v1539
        %v1556 = vadd.f32 %v1443, %v1540
        %v1557 = vadd.f32 %v1444, %v1541
        %v1558 = vadd.f32 %v1445, %v1542
        %v1559 = vadd.f32 %v1446, %v1543
        %v1560 = vadd.f32 %v1447, %v1544
        %v1561 = vadd.f32 %v1448, %v1545
        %v1562 = vadd.f32 %v1449, %v1546
        %v1563 = vadd.f32 %v1450, %v1547
        %v1564 = vadd.f32 %v1451, %v1548
        %v1565 = vadd.f32 %v1452, %v1549
        %v1566 = vld [vmem:[%s4] sm:$0x1]
        %v1567 = vld [vmem:[%s4 + $0x1] sm:$0x1]
        %v1568 = vld [vmem:[%s4 + $0x2] sm:$0x1]
        %v1569 = vld [vmem:[%s4 + $0x3] sm:$0x1]
        %v1570 = vld [vmem:[%s4 + $0x4] sm:$0x1]
        %v1571 = vld [vmem:[%s4 + $0x5] sm:$0x1]
        %v1572 = vld [vmem:[%s4 + $0x6] sm:$0x1]
        %v1573 = vld [vmem:[%s4 + $0x7] sm:$0x1]
        %v1582 = vlaneseq
        %v1583 = vshrl.u32 %v1582, 7
        %v1584 = vsub.s32 0, %v1583
        %v1585 = vrot.slane %v1566, %v1584
        %v1586 = vlaneseq
        %v1587 = vshrl.u32 %v1586, 7
        %v1588 = vsub.s32 0, %v1587
        %v1589 = vrot.slane %v1567, %v1588
        %v1590 = vlaneseq
        %v1591 = vshrl.u32 %v1590, 7
        %v1592 = vsub.s32 0, %v1591
        %v1593 = vrot.slane %v1568, %v1592
        %v1594 = vlaneseq
        %v1595 = vshrl.u32 %v1594, 7
        %v1596 = vsub.s32 0, %v1595
        %v1597 = vrot.slane %v1569, %v1596
        %v1598 = vlaneseq
        %v1599 = vshrl.u32 %v1598, 7
        %v1600 = vsub.s32 0, %v1599
        %v1601 = vrot.slane %v1570, %v1600
        %v1602 = vlaneseq
        %v1603 = vshrl.u32 %v1602, 7
        %v1604 = vsub.s32 0, %v1603
        %v1605 = vrot.slane %v1571, %v1604
        %v1606 = vlaneseq
        %v1607 = vshrl.u32 %v1606, 7
        %v1608 = vsub.s32 0, %v1607
        %v1609 = vrot.slane %v1572, %v1608
        %v1610 = vlaneseq
        %v1611 = vshrl.u32 %v1610, 7
        %v1612 = vsub.s32 0, %v1611
        %v1613 = vrot.slane %v1573, %v1612
        %1614 = vset.pattern.permute.xlu0 0
        %1615 = vperm.xlu0 %1614, %v1585
        %v1616 = vpop.permute.xlu0 %1615
        %1618 = vset.pattern.permute.xlu0 0
        %1619 = vperm.xlu0 %1618, %v1589
        %v1620 = vpop.permute.xlu0 %1619
        %1622 = vset.pattern.permute.xlu0 0
        %1623 = vperm.xlu0 %1622, %v1593
        %v1624 = vpop.permute.xlu0 %1623
        %1626 = vset.pattern.permute.xlu0 0
        %1627 = vperm.xlu0 %1626, %v1597
        %v1628 = vpop.permute.xlu0 %1627
        %1630 = vset.pattern.permute.xlu0 0
        %1631 = vperm.xlu0 %1630, %v1601
        %v1632 = vpop.permute.xlu0 %1631
        %1634 = vset.pattern.permute.xlu0 0
        %1635 = vperm.xlu0 %1634, %v1605
        %v1636 = vpop.permute.xlu0 %1635
        %1638 = vset.pattern.permute.xlu0 0
        %1639 = vperm.xlu0 %1638, %v1609
        %v1640 = vpop.permute.xlu0 %1639
        %1642 = vset.pattern.permute.xlu0 0
        %1643 = vperm.xlu0 %1642, %v1613
        %v1644 = vpop.permute.xlu0 %1643
        %v1646 = vadd.f32 %v1550, %v1616
        %v1647 = vadd.f32 %v1551, %v1616
        %v1648 = vadd.f32 %v1552, %v1620
        %v1649 = vadd.f32 %v1553, %v1620
        %v1650 = vadd.f32 %v1554, %v1624
        %v1651 = vadd.f32 %v1555, %v1624
        %v1652 = vadd.f32 %v1556, %v1628
        %v1653 = vadd.f32 %v1557, %v1628
        %v1654 = vadd.f32 %v1558, %v1632
        %v1655 = vadd.f32 %v1559, %v1632
        %v1656 = vadd.f32 %v1560, %v1636
        %v1657 = vadd.f32 %v1561, %v1636
        %v1658 = vadd.f32 %v1562, %v1640
        %v1659 = vadd.f32 %v1563, %v1640
        %v1660 = vadd.f32 %v1564, %v1644
        %v1661 = vadd.f32 %v1565, %v1644
        %v1662 = vmax.f32 %v1646, 0.0
        %v1663 = vmax.f32 %v1647, 0.0
        %v1664 = vmax.f32 %v1648, 0.0
        %v1665 = vmax.f32 %v1649, 0.0
        %v1666 = vmax.f32 %v1650, 0.0
        %v1667 = vmax.f32 %v1651, 0.0
        %v1668 = vmax.f32 %v1652, 0.0
        %v1669 = vmax.f32 %v1653, 0.0
        %v1670 = vmax.f32 %v1654, 0.0
        %v1671 = vmax.f32 %v1655, 0.0
        %v1672 = vmax.f32 %v1656, 0.0
        %v1673 = vmax.f32 %v1657, 0.0
        %v1674 = vmax.f32 %v1658, 0.0
        %v1675 = vmax.f32 %v1659, 0.0
        %v1676 = vmax.f32 %v1660, 0.0
        %v1677 = vmax.f32 %v1661, 0.0
        %vm1678 = vcmask 130048
        %1679 = vst.msk [vmem:[%s256] sm:$0xff] %vm1678, %v1662
        %1680 = vst.msk [vmem:[%s256 + $0x8] sm:$0xff] %vm1678, %v1663
        %1681 = vst.msk [vmem:[%s256 + $0x10] sm:$0xff] %vm1678, %v1664
        %1682 = vst.msk [vmem:[%s256 + $0x18] sm:$0xff] %vm1678, %v1665
        %1683 = vst.msk [vmem:[%s256 + $0x20] sm:$0xff] %vm1678, %v1666
        %1684 = vst.msk [vmem:[%s256 + $0x28] sm:$0xff] %vm1678, %v1667
        %1685 = vst.msk [vmem:[%s256 + $0x30] sm:$0xff] %vm1678, %v1668
        %1686 = vst.msk [vmem:[%s256 + $0x38] sm:$0xff] %vm1678, %v1669
        %1687 = vst.msk [vmem:[%s256 + $0x40] sm:$0xff] %vm1678, %v1670
        %1688 = vst.msk [vmem:[%s256 + $0x48] sm:$0xff] %vm1678, %v1671
        %1689 = vst.msk [vmem:[%s256 + $0x50] sm:$0xff] %vm1678, %v1672
        %1690 = vst.msk [vmem:[%s256 + $0x58] sm:$0xff] %vm1678, %v1673
        %1691 = vst.msk [vmem:[%s256 + $0x60] sm:$0xff] %vm1678, %v1674
        %1692 = vst.msk [vmem:[%s256 + $0x68] sm:$0xff] %vm1678, %v1675
        %1693 = vst.msk [vmem:[%s256 + $0x70] sm:$0xff] %vm1678, %v1676
        %1694 = vst.msk [vmem:[%s256 + $0x78] sm:$0xff] %vm1678, %v1677
        %s1695 = sand.u32 %s154, 1
        %s1696 = scalar_lea.sflag [#allocation5], %s1695
        %s1697 = sand.u32 %s154, 1
        %s1698 = smul.addr %s1697, 128
        %s1699 = scalar_lea.vmem [#allocation6], %s1698
        // Predicated region
        $region49: #{tpu_custom_call.1} parent=39 // pred_check
          %p1700 = pneg %p164
        $region50: #{tpu_custom_call.1} parent=39 // pred_check_branch
          %1702 = sbr.rel (%p1700) target = $region52
        $region51: #{tpu_custom_call.1} parent=39 // pred_region
          %s1703 = smul.u32 2, %s27
          %s1705 = ssub.s32 2048, 2048
          %1706 = vsyncadd %s1696, %s1705
          %s1707 = smul.addr %s26, 16
          %s1708 = sadd.s32 %s1703, %s1707
          %s1709 = smul.addr %s1708, 128
          %s1710 = scalar_lea.hbm %s5, %s1709
          %s1711 = sshll.u32 %s1699, 4
          %s1712 = int_to_ptr.vmem [resolvable:$true] %s1711
          %1717 = dma.vmem_to_hbm [thread:$0]  %s1712, 2048, %s1710, %s1696, 128, 128, 8
        $region52: #{tpu_custom_call.1} parent=39 // pred_fallthru
          _
      $region40: #{tpu_custom_call.1} parent=5 // pred_fallthru
        _
      %p1718 = scmp.le.s32.totalorder 2, %s17
      // Predicated region
      $region53: #{tpu_custom_call.1} parent=5 // pred_check
        %p1719 = pneg %p1718
      $region54: #{tpu_custom_call.1} parent=5 // pred_check_branch
        %1721 = sbr.rel (%p1719) target = $region56
      $region55: #{tpu_custom_call.1} parent=5 // pred_region
        %s1722 = ssub.s32 %s17, 2
        // Predicated region
        $region57: #{tpu_custom_call.1} parent=55 // pred_check
          %p1723 = pneg %p170
        $region58: #{tpu_custom_call.1} parent=55 // pred_check_branch
          %1725 = sbr.rel (%p1723) target = $region60
        $region59: #{tpu_custom_call.1} parent=55 // pred_region
          %s1726 = sand.u32 %s155, 1
          %s1727 = scalar_lea.sflag [#allocation5], %s1726
          %s1728 = sand.u32 %s155, 1
          %s1729 = smul.addr %s1728, 128
          %s1730 = scalar_lea.vmem [#allocation6], %s1729
          %1731 = dma.done %s1727, 2048
        $region60: #{tpu_custom_call.1} parent=55 // pred_fallthru
          _
      $region56: #{tpu_custom_call.1} parent=5 // pred_fallthru
        _
    $region6: #{tpu_custom_call.1} parent=1 // loop_footer
      %s21 = sadd.s32 1, %s17
    $region7: #{tpu_custom_call.1} parent=1 // loop_footer_branch
      %16 = sbr.rel target = $region3
    $region8: #{tpu_custom_call.1} parent=1 // loop_exit
      _
    %1732 = vsyncpa [#allocation4], 1
    %s1733 = scalar_lea.sflag [#allocation4], 1
    %1734 = vsyncpa %s1733, 1
    %1735 = vsyncpa [#allocation5], 1
    %s1736 = scalar_lea.sflag [#allocation5], 1
    %1737 = vsyncpa %s1736, 1

</llo_original>
